<compile_context>
chip_gen: v6e
topology: v6e:2x2x1
jax: 0.10.0
libtpu: 0.0.40
codegen_flags: <defaults>
</compile_context>

<pallas_src>
import jax
import jax.numpy as jnp
from jax.experimental import pallas as pl
from jax.experimental.pallas import tpu as pltpu

H = W = 28
CIN = 128
COUT = 128
CG = 64            # grouped channel size after the 128 -> (2, 64) split
KH = KW = 3

HP = H + 2         # 30: height padded by 1 on each side for the height unfold
WPAD = 32          # row stride padded 28 -> 32 so dh row-offsets are sublane aligned
MROWS = H * WPAD   # 896 output rows (= 7 * 128); rows with w in [28,32) are dropped
KG = KW * CG       # 192: contraction size per dh slice (dw fastest-ish: (dw, c64))

# torch module picks shift_direction = +/-1 at init; both signs are validated below.
SHIFT = 1


def _conv_kernel(a_ref, w_ref, o_ref):
    # a_ref: (HP*WPAD, KG) = (960, 192)  zero-padded im2col "core" (no dh replication)
    # w_ref: (KH, KG, COUT) = (3, 192, 128)  per-dh transposed weight slabs
    # o_ref: (MROWS, COUT) = (896, 128)
    acc = jnp.dot(a_ref[pl.ds(0, MROWS), :], w_ref[0],
                  preferred_element_type=jnp.float32)
    for dh in range(1, KH):
        acc = acc + jnp.dot(a_ref[pl.ds(dh * WPAD, MROWS), :], w_ref[dh],
                            preferred_element_type=jnp.float32)
    o_ref[...] = acc


_COST = pl.CostEstimate(
    flops=2 * MROWS * KG * COUT * KH,
    transcendentals=0,
    bytes_accessed=4 * (HP * WPAD * KG + KH * KG * COUT + MROWS * COUT),
)


def conv_matmul(a, wt):
    return pl.pallas_call(
        _conv_kernel,
        out_shape=jax.ShapeDtypeStruct((MROWS, COUT), jnp.float32),
        grid_spec=pltpu.PrefetchScalarGridSpec(
            num_scalar_prefetch=0,
            grid=(1,),                                       # single step: no per-step overhead
            in_specs=[
                pl.BlockSpec((HP * WPAD, KG), lambda i: (0, 0)),
                pl.BlockSpec((KH, KG, COUT), lambda i: (0, 0, 0)),
            ],
            out_specs=pl.BlockSpec((MROWS, COUT), lambda i: (0, 0)),
        ),
        compiler_params=pltpu.CompilerParams(
            dimension_semantics=("arbitrary",)
        ),
        cost_estimate=_COST,
    )(a, wt)


def prepare_weight(weight):
    """(COUT, KH, KW, CG) -> (KH, KW*CG, COUT). Done once, outside the hot path."""
    return jnp.transpose(weight, (1, 2, 3, 0)).reshape(KH, KG, COUT)


def forward(x, wt, shift=SHIFT):
    """Optimized path: minimal XLA glue + single Pallas matmul step."""
    # NCHW -> NHWC ('ilkj -> ikjl') and roll along W.
    y = jnp.transpose(x, (0, 2, 3, 1))[0]                    # (28, 28, 128)
    y = jnp.roll(y, shift, axis=1)

    # Width unfold (window 3, pad 1) fused with the (W,2)-roll + pair-sum.
    # Exact rewrite of reshape->roll(len-56)->reshape->sum for shift in {+1,-1}:
    #   s_dw[h,w,k] = t_dw[h,w,c0+k] + roll_w(t_dw[:,:,c1:c1+64], shift)[h,w,k]
    yp = jnp.pad(y, ((0, 0), (1, 1), (0, 0)))                # (28, 30, 128)
    c0 = 0 if shift == 1 else CG
    c1 = CG - c0
    chunks = []
    for dw in range(KW):
        t_dw = yp[:, dw:dw + W, :]                           # (28, 28, 128)
        s_dw = (t_dw[:, :, c0:c0 + CG]
                + jnp.roll(t_dw[:, :, c1:c1 + CG], shift, axis=1))
        chunks.append(s_dw)                                  # (28, 28, 64)
    a_core = jnp.concatenate(chunks, axis=-1)                # (28, 28, 192), K = (dw, c64)

    # Zero-pad: H -> 30 (height-unfold halo), W -> 32 (aligned row stride).
    a = jnp.pad(a_core, ((1, 1), (0, WPAD - W), (0, 0)))     # (30, 32, 192)
    a = a.reshape(HP * WPAD, KG)                             # (960, 192)

    out = conv_matmul(a, wt)                                 # (896, 128)
    out = out.reshape(H, WPAD, COUT)[:, :W, :]               # drop the 4 W-pad rows
    return jnp.transpose(out, (2, 0, 1))[None]               # (1, 128, 28, 28)


def forward_reference(x, weight, shift=SHIFT):
    """Independent literal jnp translation of the PyTorch module (no shared glue)."""
    t = jnp.einsum('ilkj->ikjl', x)                                      # (1,28,28,128)
    t = jnp.roll(t, shift, axis=2)
    t = t.reshape(1, 28, 28, 128)
    # F.unfold(kernel=(3,1), padding=(1,0)) on the view (N=1, C=28, H=28, W=128)
    tp = jnp.pad(t, ((0, 0), (0, 0), (1, 1), (0, 0)))
    t = jnp.stack([tp[:, :, d:d + 28, :] for d in range(3)], axis=2)     # (1,28,3,28,128)
    t = t.reshape(1, 28, 3, 28, 2, 64).reshape(1, 28, 3, 56, 64)
    t = jnp.roll(t, shift, axis=3)
    t = t.reshape(1, 28, 3, 28, 2, 64).sum(axis=4)                       # (1,28,3,28,64)
    # F.unfold(kernel=(3,1), padding=(1,0)) on the view (N=1, C=1, H=28, W=5376)
    t = t.reshape(1, 28, 3 * 28 * 64)
    tp = jnp.pad(t, ((0, 0), (1, 1), (0, 0)))
    t3 = jnp.stack([tp[:, d:d + 28, :] for d in range(3)], axis=1)       # (1,3,28,5376)
    t3 = t3.reshape(1, 3, 28, 3, 28, 64)
    return jnp.einsum('mjnlok,ijlk->mino', t3, weight,
                      precision=jax.lax.Precision.HIGHEST)               # (1,128,28,28)


if __name__ == "__main__":
    key = jax.random.PRNGKey(0)
    kx, kw = jax.random.split(key)
    # The module hard-codes the geometry via reshapes: x must be (1, 128, 28, 28).
    x = jax.random.normal(kx, (1, CIN, H, W), dtype=jnp.float32)
    weight = jax.random.normal(kw, (COUT, KH, KW, CG), dtype=jnp.float32)

    wt = jax.block_until_ready(prepare_weight(weight))   # once, outside the hot path
    fwd = jax.jit(forward, static_argnums=(2,))
    ref = jax.jit(forward_reference, static_argnums=(2,))

    # The torch module randomizes shift_direction in {+1, -1}; validate both signs.
    for shift in (1, -1):
        y = jax.block_until_ready(fwd(x, wt, shift))
        y_ref = jax.block_until_ready(ref(x, weight, shift))
        assert y.shape == (1, COUT, H, W), y.shape
        assert jnp.allclose(y, y_ref, atol=1e-3, rtol=1e-3), f"mismatch (shift={shift})"
    print("KERNEL_OK")
</pallas_src>

<mosaic_0001>
module attributes {stable_mosaic.version = 11 : i64} {
  func.func @_conv_kernel(%arg0: i32, %arg1: memref<960x192xf32, #tpu.memory_space<vmem>>, %arg2: memref<3x192x128xf32, #tpu.memory_space<vmem>>, %arg3: memref<896x128xf32, #tpu.memory_space<vmem>>) attributes {dimension_semantics = [#tpu.dimension_semantics<arbitrary>], iteration_bounds = array<i64: 1>, scalar_prefetch = 0 : i64, scratch_operands = 0 : i64, tpu.core_type = #tpu.core_type<tc>, window_params = [{pipeline_mode = #tpu.pipeline_mode<synchronous>, transform_indices = @transform_0, window_bounds = array<i64: 960, 192>}, {pipeline_mode = #tpu.pipeline_mode<synchronous>, transform_indices = @transform_1, window_bounds = array<i64: 3, 192, 128>}, {pipeline_mode = #tpu.pipeline_mode<synchronous>, transform_indices = @transform_2, window_bounds = array<i64: 896, 128>}]} {
    %c0 = arith.constant 0 : index
    %c0_0 = arith.constant 0 : index
    %0 = vector.load %arg1[%c0, %c0_0] : memref<960x192xf32, #tpu.memory_space<vmem>>, vector<896x192xf32>
    %c0_1 = arith.constant 0 : index
    %c0_2 = arith.constant 0 : index
    %c0_3 = arith.constant 0 : index
    %1 = vector.load %arg2[%c0_1, %c0_2, %c0_3] : memref<3x192x128xf32, #tpu.memory_space<vmem>>, vector<1x192x128xf32>
    %2 = vector.shape_cast %1 : vector<1x192x128xf32> to vector<192x128xf32>
    %cst = arith.constant dense<0.000000e+00> : vector<896x128xf32>
    %3 = tpu.matmul %0, %2, %cst {dimension_numbers = #tpu.dot_dimension_numbers<[1], [0], [0], [1], [0, 0, 1, 1], [], []>} : vector<896x192xf32>, vector<192x128xf32>, vector<896x128xf32> -> vector<896x128xf32>
    %c32 = arith.constant 32 : index
    %c0_4 = arith.constant 0 : index
    %4 = vector.load %arg1[%c32, %c0_4] : memref<960x192xf32, #tpu.memory_space<vmem>>, vector<896x192xf32>
    %c1 = arith.constant 1 : index
    %c0_5 = arith.constant 0 : index
    %c0_6 = arith.constant 0 : index
    %5 = vector.load %arg2[%c1, %c0_5, %c0_6] : memref<3x192x128xf32, #tpu.memory_space<vmem>>, vector<1x192x128xf32>
    %6 = vector.shape_cast %5 : vector<1x192x128xf32> to vector<192x128xf32>
    %cst_7 = arith.constant dense<0.000000e+00> : vector<896x128xf32>
    %7 = tpu.matmul %4, %6, %cst_7 {dimension_numbers = #tpu.dot_dimension_numbers<[1], [0], [0], [1], [0, 0, 1, 1], [], []>} : vector<896x192xf32>, vector<192x128xf32>, vector<896x128xf32> -> vector<896x128xf32>
    %8 = arith.addf %3, %7 : vector<896x128xf32>
    %c64 = arith.constant 64 : index
    %c0_8 = arith.constant 0 : index
    %9 = vector.load %arg1[%c64, %c0_8] : memref<960x192xf32, #tpu.memory_space<vmem>>, vector<896x192xf32>
    %c2 = arith.constant 2 : index
    %c0_9 = arith.constant 0 : index
    %c0_10 = arith.constant 0 : index
    %10 = vector.load %arg2[%c2, %c0_9, %c0_10] : memref<3x192x128xf32, #tpu.memory_space<vmem>>, vector<1x192x128xf32>
    %11 = vector.shape_cast %10 : vector<1x192x128xf32> to vector<192x128xf32>
    %cst_11 = arith.constant dense<0.000000e+00> : vector<896x128xf32>
    %12 = tpu.matmul %9, %11, %cst_11 {dimension_numbers = #tpu.dot_dimension_numbers<[1], [0], [0], [1], [0, 0, 1, 1], [], []>} : vector<896x192xf32>, vector<192x128xf32>, vector<896x128xf32> -> vector<896x128xf32>
    %13 = arith.addf %8, %12 : vector<896x128xf32>
    %c0_12 = arith.constant 0 : index
    %c0_13 = arith.constant 0 : index
    %14 = vector.load %arg3[%c0_12, %c0_13] : memref<896x128xf32, #tpu.memory_space<vmem>>, vector<896x128xf32>
    tpu.vector_store %arg3[%c0_12, %c0_13], %13 {strides = array<i32>} : memref<896x128xf32, #tpu.memory_space<vmem>>, vector<896x128xf32>,
    return
  }
  func.func @transform_0(%arg0: i32) -> (i32, i32) {
    %c0_i32 = arith.constant 0 : i32
    %c0_i32_0 = arith.constant 0 : i32
    %c0_i32_1 = arith.constant 0 : i32
    return %c0_i32, %c0_i32_0 : i32, i32
  }
  func.func @transform_1(%arg0: i32) -> (i32, i32, i32) {
    %c0_i32 = arith.constant 0 : i32
    %c0_i32_0 = arith.constant 0 : i32
    %c0_i32_1 = arith.constant 0 : i32
    %c0_i32_2 = arith.constant 0 : i32
    return %c0_i32, %c0_i32_0, %c0_i32_1 : i32, i32, i32
  }
  func.func @transform_2(%arg0: i32) -> (i32, i32) {
    %c0_i32 = arith.constant 0 : i32
    %c0_i32_0 = arith.constant 0 : i32
    %c0_i32_1 = arith.constant 0 : i32
    return %c0_i32, %c0_i32_0 : i32, i32
  }
}

</mosaic_0001>

<llo_original>
// kernel: forward.1
$region0: #{forward.1}
  #allocation0 [shape = 'u32[]', space=smem, size = 0x4, offset = 0x4, fixed_abs, tag = 'smem constant byte address 0x4 - core index']
  #allocation1 [shape = 'u32[144,128]{1,0:T(1,128)}', space=vmem, size = 0x12000, scoped, tag = 'internal scratch']
  %s0 = inlined_call_operand.vmem [shape: f32[960,192], index: 0, kind: input, shape index: {}]
  %s1 = inlined_call_operand.vmem [shape: f32[3,192,128], index: 1, kind: input, shape index: {}]
  %s2 = inlined_call_operand.vmem [shape: f32[896,128], index: 2, kind: output, shape index: {}]
  %s3 = sld [smem:[#allocation0]]
  $region18: #{forward.1} parent=0
    _
  %s5 = ssub.s32 1, %s3
  %s6 = scalar_select 0, %s5, %s3
  // Predicated region
  $region2: #{forward.1} parent=0 // pred_check
    _
  $region3: #{forward.1} parent=0 // pred_check_branch
    %8 = sbr.rel (0) target = $region5
  $region4: #{forward.1} parent=0 // pred_region
    _
  $region5: #{forward.1} parent=0 // pred_fallthru
    _
  // Predicated region
  $region6: #{forward.1} parent=0 // pred_check
    _
  $region7: #{forward.1} parent=0 // pred_check_branch
    %10 = sbr.rel (0) target = $region9
  $region8: #{forward.1} parent=0 // pred_region
    _
  $region9: #{forward.1} parent=0 // pred_fallthru
    _
  %v11 = vld [vmem:[%s0] sm:$0xff]
  %v12 = vld [vmem:[%s0 + $0x8] sm:$0xff]
  %v13 = vld [vmem:[%s0 + $0x10] sm:$0xff]
  %v14 = vld [vmem:[%s0 + $0x18] sm:$0xff]
  %v15 = vld [vmem:[%s0 + $0x20] sm:$0xff]
  %v16 = vld [vmem:[%s0 + $0x28] sm:$0xff]
  %v17 = vld [vmem:[%s0 + $0x30] sm:$0xff]
  %v18 = vld [vmem:[%s0 + $0x38] sm:$0xff]
  %v19 = vld [vmem:[%s0 + $0x40] sm:$0xff]
  %v20 = vld [vmem:[%s0 + $0x48] sm:$0xff]
  %v21 = vld [vmem:[%s0 + $0x50] sm:$0xff]
  %v22 = vld [vmem:[%s0 + $0x58] sm:$0xff]
  %v23 = vld [vmem:[%s0 + $0x60] sm:$0xff]
  %v24 = vld [vmem:[%s0 + $0x68] sm:$0xff]
  %v25 = vld [vmem:[%s0 + $0x70] sm:$0xff]
  %v26 = vld [vmem:[%s0 + $0x78] sm:$0xff]
  %v27 = vld [vmem:[%s0 + $0x80] sm:$0xff]
  %v28 = vld [vmem:[%s0 + $0x88] sm:$0xff]
  %v29 = vld [vmem:[%s0 + $0x90] sm:$0xff]
  %v30 = vld [vmem:[%s0 + $0x98] sm:$0xff]
  %v31 = vld [vmem:[%s0 + $0xa0] sm:$0xff]
  %v32 = vld [vmem:[%s0 + $0xa8] sm:$0xff]
  %v33 = vld [vmem:[%s0 + $0xb0] sm:$0xff]
  %v34 = vld [vmem:[%s0 + $0xb8] sm:$0xff]
  %v35 = vld [vmem:[%s0 + $0xc0] sm:$0xff]
  %v36 = vld [vmem:[%s0 + $0xc8] sm:$0xff]
  %v37 = vld [vmem:[%s0 + $0xd0] sm:$0xff]
  %v38 = vld [vmem:[%s0 + $0xd8] sm:$0xff]
  %v39 = vld [vmem:[%s0 + $0xe0] sm:$0xff]
  %v40 = vld [vmem:[%s0 + $0xe8] sm:$0xff]
  %v41 = vld [vmem:[%s0 + $0xf0] sm:$0xff]
  %v42 = vld [vmem:[%s0 + $0xf8] sm:$0xff]
  %v43 = vld [vmem:[%s0 + $0x100] sm:$0xff]
  %v44 = vld [vmem:[%s0 + $0x108] sm:$0xff]
  %v45 = vld [vmem:[%s0 + $0x110] sm:$0xff]
  %v46 = vld [vmem:[%s0 + $0x118] sm:$0xff]
  %v47 = vld [vmem:[%s0 + $0x120] sm:$0xff]
  %v48 = vld [vmem:[%s0 + $0x128] sm:$0xff]
  %v49 = vld [vmem:[%s0 + $0x130] sm:$0xff]
  %v50 = vld [vmem:[%s0 + $0x138] sm:$0xff]
  %v51 = vld [vmem:[%s0 + $0x140] sm:$0xff]
  %v52 = vld [vmem:[%s0 + $0x148] sm:$0xff]
  %v53 = vld [vmem:[%s0 + $0x150] sm:$0xff]
  %v54 = vld [vmem:[%s0 + $0x158] sm:$0xff]
  %v55 = vld [vmem:[%s0 + $0x160] sm:$0xff]
  %v56 = vld [vmem:[%s0 + $0x168] sm:$0xff]
  %v57 = vld [vmem:[%s0 + $0x170] sm:$0xff]
  %v58 = vld [vmem:[%s0 + $0x178] sm:$0xff]
  %v59 = vld [vmem:[%s0 + $0x180] sm:$0xff]
  %v60 = vld [vmem:[%s0 + $0x188] sm:$0xff]
  %v61 = vld [vmem:[%s0 + $0x190] sm:$0xff]
  %v62 = vld [vmem:[%s0 + $0x198] sm:$0xff]
  %v63 = vld [vmem:[%s0 + $0x1a0] sm:$0xff]
  %v64 = vld [vmem:[%s0 + $0x1a8] sm:$0xff]
  %v65 = vld [vmem:[%s0 + $0x1b0] sm:$0xff]
  %v66 = vld [vmem:[%s0 + $0x1b8] sm:$0xff]
  %v67 = vld [vmem:[%s0 + $0x1c0] sm:$0xff]
  %v68 = vld [vmem:[%s0 + $0x1c8] sm:$0xff]
  %v69 = vld [vmem:[%s0 + $0x1d0] sm:$0xff]
  %v70 = vld [vmem:[%s0 + $0x1d8] sm:$0xff]
  %v71 = vld [vmem:[%s0 + $0x1e0] sm:$0xff]
  %v72 = vld [vmem:[%s0 + $0x1e8] sm:$0xff]
  %v73 = vld [vmem:[%s0 + $0x1f0] sm:$0xff]
  %v74 = vld [vmem:[%s0 + $0x1f8] sm:$0xff]
  %v75 = vld [vmem:[%s0 + $0x200] sm:$0xff]
  %v76 = vld [vmem:[%s0 + $0x208] sm:$0xff]
  %v77 = vld [vmem:[%s0 + $0x210] sm:$0xff]
  %v78 = vld [vmem:[%s0 + $0x218] sm:$0xff]
  %v79 = vld [vmem:[%s0 + $0x220] sm:$0xff]
  %v80 = vld [vmem:[%s0 + $0x228] sm:$0xff]
  %v81 = vld [vmem:[%s0 + $0x230] sm:$0xff]
  %v82 = vld [vmem:[%s0 + $0x238] sm:$0xff]
  %v83 = vld [vmem:[%s0 + $0x240] sm:$0xff]
  %v84 = vld [vmem:[%s0 + $0x248] sm:$0xff]
  %v85 = vld [vmem:[%s0 + $0x250] sm:$0xff]
  %v86 = vld [vmem:[%s0 + $0x258] sm:$0xff]
  %v87 = vld [vmem:[%s0 + $0x260] sm:$0xff]
  %v88 = vld [vmem:[%s0 + $0x268] sm:$0xff]
  %v89 = vld [vmem:[%s0 + $0x270] sm:$0xff]
  %v90 = vld [vmem:[%s0 + $0x278] sm:$0xff]
  %v91 = vld [vmem:[%s0 + $0x280] sm:$0xff]
  %v92 = vld [vmem:[%s0 + $0x288] sm:$0xff]
  %v93 = vld [vmem:[%s0 + $0x290] sm:$0xff]
  %v94 = vld [vmem:[%s0 + $0x298] sm:$0xff]
  %v95 = vld [vmem:[%s0 + $0x2a0] sm:$0xff]
  %v96 = vld [vmem:[%s0 + $0x2a8] sm:$0xff]
  %v97 = vld [vmem:[%s0 + $0x2b0] sm:$0xff]
  %v98 = vld [vmem:[%s0 + $0x2b8] sm:$0xff]
  %v99 = vld [vmem:[%s0 + $0x2c0] sm:$0xff]
  %v100 = vld [vmem:[%s0 + $0x2c8] sm:$0xff]
  %v101 = vld [vmem:[%s0 + $0x2d0] sm:$0xff]
  %v102 = vld [vmem:[%s0 + $0x2d8] sm:$0xff]
  %v103 = vld [vmem:[%s0 + $0x2e0] sm:$0xff]
  %v104 = vld [vmem:[%s0 + $0x2e8] sm:$0xff]
  %v105 = vld [vmem:[%s0 + $0x2f0] sm:$0xff]
  %v106 = vld [vmem:[%s0 + $0x2f8] sm:$0xff]
  %v107 = vld [vmem:[%s0 + $0x300] sm:$0xff]
  %v108 = vld [vmem:[%s0 + $0x308] sm:$0xff]
  %v109 = vld [vmem:[%s0 + $0x310] sm:$0xff]
  %v110 = vld [vmem:[%s0 + $0x318] sm:$0xff]
  %v111 = vld [vmem:[%s0 + $0x320] sm:$0xff]
  %v112 = vld [vmem:[%s0 + $0x328] sm:$0xff]
  %v113 = vld [vmem:[%s0 + $0x330] sm:$0xff]
  %v114 = vld [vmem:[%s0 + $0x338] sm:$0xff]
  %v115 = vld [vmem:[%s0 + $0x340] sm:$0xff]
  %v116 = vld [vmem:[%s0 + $0x348] sm:$0xff]
  %v117 = vld [vmem:[%s0 + $0x350] sm:$0xff]
  %v118 = vld [vmem:[%s0 + $0x358] sm:$0xff]
  %v119 = vld [vmem:[%s0 + $0x360] sm:$0xff]
  %v120 = vld [vmem:[%s0 + $0x368] sm:$0xff]
  %v121 = vld [vmem:[%s0 + $0x370] sm:$0xff]
  %v122 = vld [vmem:[%s0 + $0x378] sm:$0xff]
  %v123 = vld [vmem:[%s0 + $0x380] sm:$0xff]
  %v124 = vld [vmem:[%s0 + $0x388] sm:$0xff]
  %v125 = vld [vmem:[%s0 + $0x390] sm:$0xff]
  %v126 = vld [vmem:[%s0 + $0x398] sm:$0xff]
  %v127 = vld [vmem:[%s0 + $0x3a0] sm:$0xff]
  %v128 = vld [vmem:[%s0 + $0x3a8] sm:$0xff]
  %v129 = vld [vmem:[%s0 + $0x3b0] sm:$0xff]
  %v130 = vld [vmem:[%s0 + $0x3b8] sm:$0xff]
  %v131 = vld [vmem:[%s0 + $0x3c0] sm:$0xff]
  %v132 = vld [vmem:[%s0 + $0x3c8] sm:$0xff]
  %v133 = vld [vmem:[%s0 + $0x3d0] sm:$0xff]
  %v134 = vld [vmem:[%s0 + $0x3d8] sm:$0xff]
  %v135 = vld [vmem:[%s0 + $0x3e0] sm:$0xff]
  %v136 = vld [vmem:[%s0 + $0x3e8] sm:$0xff]
  %v137 = vld [vmem:[%s0 + $0x3f0] sm:$0xff]
  %v138 = vld [vmem:[%s0 + $0x3f8] sm:$0xff]
  %v139 = vld [vmem:[%s0 + $0x400] sm:$0xff]
  %v140 = vld [vmem:[%s0 + $0x408] sm:$0xff]
  %v141 = vld [vmem:[%s0 + $0x410] sm:$0xff]
  %v142 = vld [vmem:[%s0 + $0x418] sm:$0xff]
  %v143 = vld [vmem:[%s0 + $0x420] sm:$0xff]
  %v144 = vld [vmem:[%s0 + $0x428] sm:$0xff]
  %v145 = vld [vmem:[%s0 + $0x430] sm:$0xff]
  %v146 = vld [vmem:[%s0 + $0x438] sm:$0xff]
  %v147 = vld [vmem:[%s0 + $0x440] sm:$0xff]
  %v148 = vld [vmem:[%s0 + $0x448] sm:$0xff]
  %v149 = vld [vmem:[%s0 + $0x450] sm:$0xff]
  %v150 = vld [vmem:[%s0 + $0x458] sm:$0xff]
  %v151 = vld [vmem:[%s0 + $0x460] sm:$0xff]
  %v152 = vld [vmem:[%s0 + $0x468] sm:$0xff]
  %v153 = vld [vmem:[%s0 + $0x470] sm:$0xff]
  %v154 = vld [vmem:[%s0 + $0x478] sm:$0xff]
  %v155 = vld [vmem:[%s0 + $0x480] sm:$0xff]
  %v156 = vld [vmem:[%s0 + $0x488] sm:$0xff]
  %v157 = vld [vmem:[%s0 + $0x490] sm:$0xff]
  %v158 = vld [vmem:[%s0 + $0x498] sm:$0xff]
  %v159 = vld [vmem:[%s0 + $0x4a0] sm:$0xff]
  %v160 = vld [vmem:[%s0 + $0x4a8] sm:$0xff]
  %v161 = vld [vmem:[%s0 + $0x4b0] sm:$0xff]
  %v162 = vld [vmem:[%s0 + $0x4b8] sm:$0xff]
  %v163 = vld [vmem:[%s0 + $0x4c0] sm:$0xff]
  %v164 = vld [vmem:[%s0 + $0x4c8] sm:$0xff]
  %v165 = vld [vmem:[%s0 + $0x4d0] sm:$0xff]
  %v166 = vld [vmem:[%s0 + $0x4d8] sm:$0xff]
  %v167 = vld [vmem:[%s0 + $0x4e0] sm:$0xff]
  %v168 = vld [vmem:[%s0 + $0x4e8] sm:$0xff]
  %v169 = vld [vmem:[%s0 + $0x4f0] sm:$0xff]
  %v170 = vld [vmem:[%s0 + $0x4f8] sm:$0xff]
  %v171 = vld [vmem:[%s0 + $0x500] sm:$0xff]
  %v172 = vld [vmem:[%s0 + $0x508] sm:$0xff]
  %v173 = vld [vmem:[%s0 + $0x510] sm:$0xff]
  %v174 = vld [vmem:[%s0 + $0x518] sm:$0xff]
  %v175 = vld [vmem:[%s0 + $0x520] sm:$0xff]
  %v176 = vld [vmem:[%s0 + $0x528] sm:$0xff]
  %v177 = vld [vmem:[%s0 + $0x530] sm:$0xff]
  %v178 = vld [vmem:[%s0 + $0x538] sm:$0xff]
  %v179 = vld [vmem:[%s0 + $0x540] sm:$0xff]
  %v180 = vld [vmem:[%s0 + $0x548] sm:$0xff]
  %v181 = vld [vmem:[%s0 + $0x550] sm:$0xff]
  %v182 = vld [vmem:[%s0 + $0x558] sm:$0xff]
  %v183 = vld [vmem:[%s0 + $0x560] sm:$0xff]
  %v184 = vld [vmem:[%s0 + $0x568] sm:$0xff]
  %v185 = vld [vmem:[%s0 + $0x570] sm:$0xff]
  %v186 = vld [vmem:[%s0 + $0x578] sm:$0xff]
  %v187 = vld [vmem:[%s0 + $0x580] sm:$0xff]
  %v188 = vld [vmem:[%s0 + $0x588] sm:$0xff]
  %v189 = vld [vmem:[%s0 + $0x590] sm:$0xff]
  %v190 = vld [vmem:[%s0 + $0x598] sm:$0xff]
  %v191 = vld [vmem:[%s0 + $0x5a0] sm:$0xff]
  %v192 = vld [vmem:[%s0 + $0x5a8] sm:$0xff]
  %v193 = vld [vmem:[%s0 + $0x5b0] sm:$0xff]
  %v194 = vld [vmem:[%s0 + $0x5b8] sm:$0xff]
  %v195 = vld [vmem:[%s0 + $0x5c0] sm:$0xff]
  %v196 = vld [vmem:[%s0 + $0x5c8] sm:$0xff]
  %v197 = vld [vmem:[%s0 + $0x5d0] sm:$0xff]
  %v198 = vld [vmem:[%s0 + $0x5d8] sm:$0xff]
  %v199 = vld [vmem:[%s0 + $0x5e0] sm:$0xff]
  %v200 = vld [vmem:[%s0 + $0x5e8] sm:$0xff]
  %v201 = vld [vmem:[%s0 + $0x5f0] sm:$0xff]
  %v202 = vld [vmem:[%s0 + $0x5f8] sm:$0xff]
  %v203 = vld [vmem:[%s0 + $0x600] sm:$0xff]
  %v204 = vld [vmem:[%s0 + $0x608] sm:$0xff]
  %v205 = vld [vmem:[%s0 + $0x610] sm:$0xff]
  %v206 = vld [vmem:[%s0 + $0x618] sm:$0xff]
  %v207 = vld [vmem:[%s0 + $0x620] sm:$0xff]
  %v208 = vld [vmem:[%s0 + $0x628] sm:$0xff]
  %v209 = vld [vmem:[%s0 + $0x630] sm:$0xff]
  %v210 = vld [vmem:[%s0 + $0x638] sm:$0xff]
  %v211 = vld [vmem:[%s0 + $0x640] sm:$0xff]
  %v212 = vld [vmem:[%s0 + $0x648] sm:$0xff]
  %v213 = vld [vmem:[%s0 + $0x650] sm:$0xff]
  %v214 = vld [vmem:[%s0 + $0x658] sm:$0xff]
  %v215 = vld [vmem:[%s0 + $0x660] sm:$0xff]
  %v216 = vld [vmem:[%s0 + $0x668] sm:$0xff]
  %v217 = vld [vmem:[%s0 + $0x670] sm:$0xff]
  %v218 = vld [vmem:[%s0 + $0x678] sm:$0xff]
  %v219 = vld [vmem:[%s0 + $0x680] sm:$0xff]
  %v220 = vld [vmem:[%s0 + $0x688] sm:$0xff]
  %v221 = vld [vmem:[%s0 + $0x690] sm:$0xff]
  %v222 = vld [vmem:[%s0 + $0x698] sm:$0xff]
  %v223 = vld [vmem:[%s0 + $0x6a0] sm:$0xff]
  %v224 = vld [vmem:[%s0 + $0x6a8] sm:$0xff]
  %v225 = vld [vmem:[%s0 + $0x6b0] sm:$0xff]
  %v226 = vld [vmem:[%s0 + $0x6b8] sm:$0xff]
  %v227 = vld [vmem:[%s0 + $0x6c0] sm:$0xff]
  %v228 = vld [vmem:[%s0 + $0x6c8] sm:$0xff]
  %v229 = vld [vmem:[%s0 + $0x6d0] sm:$0xff]
  %v230 = vld [vmem:[%s0 + $0x6d8] sm:$0xff]
  %v231 = vld [vmem:[%s0 + $0x6e0] sm:$0xff]
  %v232 = vld [vmem:[%s0 + $0x6e8] sm:$0xff]
  %v233 = vld [vmem:[%s0 + $0x6f0] sm:$0xff]
  %v234 = vld [vmem:[%s0 + $0x6f8] sm:$0xff]
  %v235 = vld [vmem:[%s1] sm:$0xff]
  %v236 = vld [vmem:[%s1 + $0x8] sm:$0xff]
  %v237 = vld [vmem:[%s1 + $0x10] sm:$0xff]
  %v238 = vld [vmem:[%s1 + $0x18] sm:$0xff]
  %v239 = vld [vmem:[%s1 + $0x20] sm:$0xff]
  %v240 = vld [vmem:[%s1 + $0x28] sm:$0xff]
  %v241 = vld [vmem:[%s1 + $0x30] sm:$0xff]
  %v242 = vld [vmem:[%s1 + $0x38] sm:$0xff]
  %v243 = vld [vmem:[%s1 + $0x40] sm:$0xff]
  %v244 = vld [vmem:[%s1 + $0x48] sm:$0xff]
  %v245 = vld [vmem:[%s1 + $0x50] sm:$0xff]
  %v246 = vld [vmem:[%s1 + $0x58] sm:$0xff]
  %v247 = vld [vmem:[%s1 + $0x60] sm:$0xff]
  %v248 = vld [vmem:[%s1 + $0x68] sm:$0xff]
  %v249 = vld [vmem:[%s1 + $0x70] sm:$0xff]
  %v250 = vld [vmem:[%s1 + $0x78] sm:$0xff]
  %v251 = vld [vmem:[%s1 + $0x80] sm:$0xff]
  %v252 = vld [vmem:[%s1 + $0x88] sm:$0xff]
  %v253 = vld [vmem:[%s1 + $0x90] sm:$0xff]
  %v254 = vld [vmem:[%s1 + $0x98] sm:$0xff]
  %v255 = vld [vmem:[%s1 + $0xa0] sm:$0xff]
  %v256 = vld [vmem:[%s1 + $0xa8] sm:$0xff]
  %v257 = vld [vmem:[%s1 + $0xb0] sm:$0xff]
  %v258 = vld [vmem:[%s1 + $0xb8] sm:$0xff]
  %v259 = vld [vmem:[%s0 + $0x700] sm:$0xff]
  %v260 = vld [vmem:[%s0 + $0x708] sm:$0xff]
  %v261 = vld [vmem:[%s0 + $0x710] sm:$0xff]
  %v262 = vld [vmem:[%s0 + $0x718] sm:$0xff]
  %v263 = vld [vmem:[%s0 + $0x720] sm:$0xff]
  %v264 = vld [vmem:[%s0 + $0x728] sm:$0xff]
  %v265 = vld [vmem:[%s0 + $0x730] sm:$0xff]
  %v266 = vld [vmem:[%s0 + $0x738] sm:$0xff]
  %s267 = scalar_lea.vmem %s1, 192
  %v268 = vld [vmem:[%s267] sm:$0xff]
  %v269 = vld [vmem:[%s267 + $0x8] sm:$0xff]
  %v270 = vld [vmem:[%s267 + $0x10] sm:$0xff]
  %v271 = vld [vmem:[%s267 + $0x18] sm:$0xff]
  %v272 = vld [vmem:[%s267 + $0x20] sm:$0xff]
  %v273 = vld [vmem:[%s267 + $0x28] sm:$0xff]
  %v274 = vld [vmem:[%s267 + $0x30] sm:$0xff]
  %v275 = vld [vmem:[%s267 + $0x38] sm:$0xff]
  %v276 = vld [vmem:[%s267 + $0x40] sm:$0xff]
  %v277 = vld [vmem:[%s267 + $0x48] sm:$0xff]
  %v278 = vld [vmem:[%s267 + $0x50] sm:$0xff]
  %v279 = vld [vmem:[%s267 + $0x58] sm:$0xff]
  %v280 = vld [vmem:[%s267 + $0x60] sm:$0xff]
  %v281 = vld [vmem:[%s267 + $0x68] sm:$0xff]
  %v282 = vld [vmem:[%s267 + $0x70] sm:$0xff]
  %v283 = vld [vmem:[%s267 + $0x78] sm:$0xff]
  %v284 = vld [vmem:[%s267 + $0x80] sm:$0xff]
  %v285 = vld [vmem:[%s267 + $0x88] sm:$0xff]
  %v286 = vld [vmem:[%s267 + $0x90] sm:$0xff]
  %v287 = vld [vmem:[%s267 + $0x98] sm:$0xff]
  %v288 = vld [vmem:[%s267 + $0xa0] sm:$0xff]
  %v289 = vld [vmem:[%s267 + $0xa8] sm:$0xff]
  %v290 = vld [vmem:[%s267 + $0xb0] sm:$0xff]
  %v291 = vld [vmem:[%s267 + $0xb8] sm:$0xff]
  %vm292 = vcmask 523264
  %v294 = vsel %vm292, %v20, 0
  %v297 = vsel %vm292, %v22, 0
  %v300 = vsel %vm292, %v24, 0
  %v303 = vsel %vm292, %v26, 0
  %v306 = vsel %vm292, %v28, 0
  %v309 = vsel %vm292, %v30, 0
  %v312 = vsel %vm292, %v32, 0
  %v315 = vsel %vm292, %v34, 0
  %v318 = vsel %vm292, %v36, 0
  %v321 = vsel %vm292, %v38, 0
  %v324 = vsel %vm292, %v40, 0
  %v327 = vsel %vm292, %v42, 0
  %v330 = vsel %vm292, %v44, 0
  %v333 = vsel %vm292, %v46, 0
  %v336 = vsel %vm292, %v48, 0
  %v339 = vsel %vm292, %v50, 0
  %v342 = vsel %vm292, %v52, 0
  %v345 = vsel %vm292, %v54, 0
  %v348 = vsel %vm292, %v56, 0
  %v351 = vsel %vm292, %v58, 0
  %v354 = vsel %vm292, %v60, 0
  %v357 = vsel %vm292, %v62, 0
  %v360 = vsel %vm292, %v64, 0
  %v363 = vsel %vm292, %v66, 0
  %v366 = vsel %vm292, %v68, 0
  %v369 = vsel %vm292, %v70, 0
  %v372 = vsel %vm292, %v72, 0
  %v375 = vsel %vm292, %v74, 0
  %v378 = vsel %vm292, %v76, 0
  %v381 = vsel %vm292, %v78, 0
  %v384 = vsel %vm292, %v80, 0
  %v387 = vsel %vm292, %v82, 0
  %v390 = vsel %vm292, %v84, 0
  %v393 = vsel %vm292, %v86, 0
  %v396 = vsel %vm292, %v88, 0
  %v399 = vsel %vm292, %v90, 0
  %v402 = vsel %vm292, %v92, 0
  %v405 = vsel %vm292, %v94, 0
  %v408 = vsel %vm292, %v96, 0
  %v411 = vsel %vm292, %v98, 0
  %v414 = vsel %vm292, %v100, 0
  %v417 = vsel %vm292, %v102, 0
  %v420 = vsel %vm292, %v104, 0
  %v423 = vsel %vm292, %v106, 0
  %v426 = vsel %vm292, %v108, 0
  %v429 = vsel %vm292, %v110, 0
  %v432 = vsel %vm292, %v112, 0
  %v435 = vsel %vm292, %v114, 0
  %v438 = vsel %vm292, %v116, 0
  %v441 = vsel %vm292, %v118, 0
  %v444 = vsel %vm292, %v120, 0
  %v447 = vsel %vm292, %v122, 0
  %v450 = vsel %vm292, %v124, 0
  %v453 = vsel %vm292, %v126, 0
  %v456 = vsel %vm292, %v128, 0
  %v459 = vsel %vm292, %v130, 0
  %v462 = vsel %vm292, %v132, 0
  %v465 = vsel %vm292, %v134, 0
  %v468 = vsel %vm292, %v136, 0
  %v471 = vsel %vm292, %v138, 0
  %v474 = vsel %vm292, %v140, 0
  %v477 = vsel %vm292, %v142, 0
  %v480 = vsel %vm292, %v144, 0
  %v483 = vsel %vm292, %v146, 0
  %v486 = vsel %vm292, %v148, 0
  %v489 = vsel %vm292, %v150, 0
  %v492 = vsel %vm292, %v152, 0
  %v495 = vsel %vm292, %v154, 0
  %v498 = vsel %vm292, %v156, 0
  %v501 = vsel %vm292, %v158, 0
  %v504 = vsel %vm292, %v160, 0
  %v507 = vsel %vm292, %v162, 0
  %v510 = vsel %vm292, %v164, 0
  %v513 = vsel %vm292, %v166, 0
  %v516 = vsel %vm292, %v168, 0
  %v519 = vsel %vm292, %v170, 0
  %v522 = vsel %vm292, %v172, 0
  %v525 = vsel %vm292, %v174, 0
  %v528 = vsel %vm292, %v176, 0
  %v531 = vsel %vm292, %v178, 0
  %v534 = vsel %vm292, %v180, 0
  %v537 = vsel %vm292, %v182, 0
  %v540 = vsel %vm292, %v184, 0
  %v543 = vsel %vm292, %v186, 0
  %v546 = vsel %vm292, %v188, 0
  %v549 = vsel %vm292, %v190, 0
  %v552 = vsel %vm292, %v192, 0
  %v555 = vsel %vm292, %v194, 0
  %v558 = vsel %vm292, %v196, 0
  %v561 = vsel %vm292, %v198, 0
  %v564 = vsel %vm292, %v200, 0
  %v567 = vsel %vm292, %v202, 0
  %v570 = vsel %vm292, %v204, 0
  %v573 = vsel %vm292, %v206, 0
  %v576 = vsel %vm292, %v208, 0
  %v579 = vsel %vm292, %v210, 0
  %v582 = vsel %vm292, %v212, 0
  %v585 = vsel %vm292, %v214, 0
  %v588 = vsel %vm292, %v216, 0
  %v591 = vsel %vm292, %v218, 0
  %v594 = vsel %vm292, %v220, 0
  %v597 = vsel %vm292, %v222, 0
  %v600 = vsel %vm292, %v224, 0
  %v603 = vsel %vm292, %v226, 0
  %v606 = vsel %vm292, %v228, 0
  %v609 = vsel %vm292, %v230, 0
  %v612 = vsel %vm292, %v232, 0
  %v615 = vsel %vm292, %v234, 0
  %v618 = vsel %vm292, %v260, 0
  %v621 = vsel %vm292, %v262, 0
  %v624 = vsel %vm292, %v264, 0
  %v627 = vsel %vm292, %v266, 0
  %629 = vmatprep.subr.mxu0 0.0
  %630 = vmatpush1.msra.mxu0 %v283
  %631 = vmatprep.subr.mxu0 0.0
  %632 = vmatpush1.msra.mxu0 %v282
  %633 = vmatprep.subr.mxu0 0.0
  %634 = vmatpush1.msra.mxu0 %v281
  %635 = vmatprep.subr.mxu0 0.0
  %636 = vmatpush1.msra.mxu0 %v280
  %637 = vmatprep.subr.mxu0 0.0
  %638 = vmatpush1.msra.mxu0 %v279
  %639 = vmatprep.subr.mxu0 0.0
  %640 = vmatpush1.msra.mxu0 %v278
  %641 = vmatprep.subr.mxu0 0.0
  %642 = vmatpush1.msra.mxu0 %v277
  %643 = vmatprep.subr.mxu0 0.0
  %644 = vmatpush1.msra.mxu0 %v276
  %645 = vmatprep.subr.mxu0 0.0
  %646 = vmatpush1.msra.mxu0 %v275
  %647 = vmatprep.subr.mxu0 0.0
  %648 = vmatpush1.msra.mxu0 %v274
  %649 = vmatprep.subr.mxu0 0.0
  %650 = vmatpush1.msra.mxu0 %v273
  %651 = vmatprep.subr.mxu0 0.0
  %652 = vmatpush1.msra.mxu0 %v272
  %653 = vmatprep.subr.mxu0 0.0
  %654 = vmatpush1.msra.mxu0 %v271
  %655 = vmatprep.subr.mxu0 0.0
  %656 = vmatpush1.msra.mxu0 %v270
  %657 = vmatprep.subr.mxu0 0.0
  %658 = vmatpush1.msra.mxu0 %v269
  %659 = vmatprep.subr.mxu0 0.0
  %660 = vmatpush1.msra.mxu0 %v268
  %661 = vmatprep.subr.mxu0 0.0
  %662 = vmatpush2.msra.mxu0 0.0
  %663 = vmatprep.subr.mxu0 0.0
  %664 = vmatpush2.msra.mxu0 0.0
  %665 = vmatprep.subr.mxu0 0.0
  %666 = vmatpush2.msra.mxu0 0.0
  %667 = vmatprep.subr.mxu0 0.0
  %668 = vmatpush2.msra.mxu0 0.0
  %669 = vmatprep.subr.mxu0 0.0
  %670 = vmatpush2.msra.mxu0 0.0
  %671 = vmatprep.subr.mxu0 0.0
  %672 = vmatpush2.msra.mxu0 0.0
  %673 = vmatprep.subr.mxu0 0.0
  %674 = vmatpush2.msra.mxu0 0.0
  %675 = vmatprep.subr.mxu0 0.0
  %676 = vmatpush2.msra.mxu0 0.0
  %677 = vmatprep.subr.mxu0 0.0
  %678 = vmatpush2.msra.mxu0 %v291
  %679 = vmatprep.subr.mxu0 0.0
  %680 = vmatpush2.msra.mxu0 %v290
  %681 = vmatprep.subr.mxu0 0.0
  %682 = vmatpush2.msra.mxu0 %v289
  %683 = vmatprep.subr.mxu0 0.0
  %684 = vmatpush2.msra.mxu0 %v288
  %685 = vmatprep.subr.mxu0 0.0
  %686 = vmatpush2.msra.mxu0 %v287
  %687 = vmatprep.subr.mxu0 0.0
  %688 = vmatpush2.msra.mxu0 %v286
  %689 = vmatprep.subr.mxu0 0.0
  %690 = vmatpush2.msra.mxu0 %v285
  %691 = vmatprep.subr.mxu0 0.0
  %692 = vmatpush2.msra.mxu0 %v284
  %693 = vmatprep.mubr.f32.mxu0 %v294
  %694 = vmatmul.mubr.f32.gmra.mxu0 %v19
  %v695 = vpop.f32.mrf.mxu0
  %v696 = vadd.f32 0.0, %v695
  %v697 = vpop.f32.mrf.mxu0
  %698 = vmatprep.mubr.f32.mxu0 %v297
  %699 = vmatmul.mubr.f32.gmra.mxu0 %v21
  %v700 = vpop.f32.mrf.mxu0
  %v701 = vadd.f32 0.0, %v700
  %v702 = vpop.f32.mrf.mxu0
  %703 = vmatprep.mubr.f32.mxu0 %v300
  %704 = vmatmul.mubr.f32.gmra.mxu0 %v23
  %v705 = vpop.f32.mrf.mxu0
  %v706 = vadd.f32 0.0, %v705
  %v707 = vpop.f32.mrf.mxu0
  %708 = vmatprep.mubr.f32.mxu0 %v303
  %709 = vmatmul.mubr.f32.gmra.mxu0 %v25
  %v710 = vpop.f32.mrf.mxu0
  %v711 = vadd.f32 0.0, %v710
  %v712 = vpop.f32.mrf.mxu0
  %713 = vmatprep.mubr.f32.mxu0 %v306
  %714 = vmatmul.mubr.f32.gmra.mxu0 %v27
  %v715 = vpop.f32.mrf.mxu0
  %v716 = vadd.f32 0.0, %v715
  %v717 = vpop.f32.mrf.mxu0
  %718 = vmatprep.mubr.f32.mxu0 %v309
  %719 = vmatmul.mubr.f32.gmra.mxu0 %v29
  %v720 = vpop.f32.mrf.mxu0
  %v721 = vadd.f32 0.0, %v720
  %v722 = vpop.f32.mrf.mxu0
  %723 = vmatprep.mubr.f32.mxu0 %v312
  %724 = vmatmul.mubr.f32.gmra.mxu0 %v31
  %v725 = vpop.f32.mrf.mxu0
  %v726 = vadd.f32 0.0, %v725
  %v727 = vpop.f32.mrf.mxu0
  %728 = vmatprep.mubr.f32.mxu0 %v315
  %729 = vmatmul.mubr.f32.gmra.mxu0 %v33
  %v730 = vpop.f32.mrf.mxu0
  %v731 = vadd.f32 0.0, %v730
  %v732 = vpop.f32.mrf.mxu0
  %733 = vmatprep.mubr.f32.mxu0 %v318
  %734 = vmatmul.mubr.f32.gmra.mxu0 %v35
  %v735 = vpop.f32.mrf.mxu0
  %v736 = vadd.f32 0.0, %v735
  %v737 = vpop.f32.mrf.mxu0
  %738 = vmatprep.mubr.f32.mxu0 %v321
  %739 = vmatmul.mubr.f32.gmra.mxu0 %v37
  %v740 = vpop.f32.mrf.mxu0
  %v741 = vadd.f32 0.0, %v740
  %v742 = vpop.f32.mrf.mxu0
  %743 = vmatprep.mubr.f32.mxu0 %v324
  %744 = vmatmul.mubr.f32.gmra.mxu0 %v39
  %v745 = vpop.f32.mrf.mxu0
  %v746 = vadd.f32 0.0, %v745
  %v747 = vpop.f32.mrf.mxu0
  %748 = vmatprep.mubr.f32.mxu0 %v327
  %749 = vmatmul.mubr.f32.gmra.mxu0 %v41
  %v750 = vpop.f32.mrf.mxu0
  %v751 = vadd.f32 0.0, %v750
  %v752 = vpop.f32.mrf.mxu0
  %753 = vmatprep.mubr.f32.mxu0 %v330
  %754 = vmatmul.mubr.f32.gmra.mxu0 %v43
  %v755 = vpop.f32.mrf.mxu0
  %v756 = vadd.f32 0.0, %v755
  %v757 = vpop.f32.mrf.mxu0
  %758 = vmatprep.mubr.f32.mxu0 %v333
  %759 = vmatmul.mubr.f32.gmra.mxu0 %v45
  %v760 = vpop.f32.mrf.mxu0
  %v761 = vadd.f32 0.0, %v760
  %v762 = vpop.f32.mrf.mxu0
  %763 = vmatprep.mubr.f32.mxu0 %v336
  %764 = vmatmul.mubr.f32.gmra.mxu0 %v47
  %v765 = vpop.f32.mrf.mxu0
  %v766 = vadd.f32 0.0, %v765
  %v767 = vpop.f32.mrf.mxu0
  %768 = vmatprep.mubr.f32.mxu0 %v339
  %769 = vmatmul.mubr.f32.gmra.mxu0 %v49
  %v770 = vpop.f32.mrf.mxu0
  %v771 = vadd.f32 0.0, %v770
  %v772 = vpop.f32.mrf.mxu0
  %773 = vmatprep.mubr.f32.mxu0 %v342
  %774 = vmatmul.mubr.f32.gmra.mxu0 %v51
  %v775 = vpop.f32.mrf.mxu0
  %v776 = vadd.f32 0.0, %v775
  %v777 = vpop.f32.mrf.mxu0
  %778 = vmatprep.mubr.f32.mxu0 %v345
  %779 = vmatmul.mubr.f32.gmra.mxu0 %v53
  %v780 = vpop.f32.mrf.mxu0
  %v781 = vadd.f32 0.0, %v780
  %v782 = vpop.f32.mrf.mxu0
  %783 = vmatprep.mubr.f32.mxu0 %v348
  %784 = vmatmul.mubr.f32.gmra.mxu0 %v55
  %v785 = vpop.f32.mrf.mxu0
  %v786 = vadd.f32 0.0, %v785
  %v787 = vpop.f32.mrf.mxu0
  %788 = vmatprep.mubr.f32.mxu0 %v351
  %789 = vmatmul.mubr.f32.gmra.mxu0 %v57
  %v790 = vpop.f32.mrf.mxu0
  %v791 = vadd.f32 0.0, %v790
  %v792 = vpop.f32.mrf.mxu0
  %793 = vmatprep.mubr.f32.mxu0 %v354
  %794 = vmatmul.mubr.f32.gmra.mxu0 %v59
  %v795 = vpop.f32.mrf.mxu0
  %v796 = vadd.f32 0.0, %v795
  %v797 = vpop.f32.mrf.mxu0
  %798 = vmatprep.mubr.f32.mxu0 %v357
  %799 = vmatmul.mubr.f32.gmra.mxu0 %v61
  %v800 = vpop.f32.mrf.mxu0
  %v801 = vadd.f32 0.0, %v800
  %v802 = vpop.f32.mrf.mxu0
  %803 = vmatprep.mubr.f32.mxu0 %v360
  %804 = vmatmul.mubr.f32.gmra.mxu0 %v63
  %v805 = vpop.f32.mrf.mxu0
  %v806 = vadd.f32 0.0, %v805
  %v807 = vpop.f32.mrf.mxu0
  %808 = vmatprep.mubr.f32.mxu0 %v363
  %809 = vmatmul.mubr.f32.gmra.mxu0 %v65
  %v810 = vpop.f32.mrf.mxu0
  %v811 = vadd.f32 0.0, %v810
  %v812 = vpop.f32.mrf.mxu0
  %813 = vmatprep.mubr.f32.mxu0 %v366
  %814 = vmatmul.mubr.f32.gmra.mxu0 %v67
  %v815 = vpop.f32.mrf.mxu0
  %v816 = vadd.f32 0.0, %v815
  %v817 = vpop.f32.mrf.mxu0
  %818 = vmatprep.mubr.f32.mxu0 %v369
  %819 = vmatmul.mubr.f32.gmra.mxu0 %v69
  %v820 = vpop.f32.mrf.mxu0
  %v821 = vadd.f32 0.0, %v820
  %v822 = vpop.f32.mrf.mxu0
  %823 = vmatprep.mubr.f32.mxu0 %v372
  %824 = vmatmul.mubr.f32.gmra.mxu0 %v71
  %v825 = vpop.f32.mrf.mxu0
  %v826 = vadd.f32 0.0, %v825
  %v827 = vpop.f32.mrf.mxu0
  %828 = vmatprep.mubr.f32.mxu0 %v375
  %829 = vmatmul.mubr.f32.gmra.mxu0 %v73
  %v830 = vpop.f32.mrf.mxu0
  %v831 = vadd.f32 0.0, %v830
  %v832 = vpop.f32.mrf.mxu0
  %833 = vmatprep.mubr.f32.mxu0 %v378
  %834 = vmatmul.mubr.f32.gmra.mxu0 %v75
  %v835 = vpop.f32.mrf.mxu0
  %v836 = vadd.f32 0.0, %v835
  %v837 = vpop.f32.mrf.mxu0
  %838 = vmatprep.mubr.f32.mxu0 %v381
  %839 = vmatmul.mubr.f32.gmra.mxu0 %v77
  %v840 = vpop.f32.mrf.mxu0
  %v841 = vadd.f32 0.0, %v840
  %v842 = vpop.f32.mrf.mxu0
  %843 = vmatprep.mubr.f32.mxu0 %v384
  %844 = vmatmul.mubr.f32.gmra.mxu0 %v79
  %v845 = vpop.f32.mrf.mxu0
  %v846 = vadd.f32 0.0, %v845
  %v847 = vpop.f32.mrf.mxu0
  %848 = vmatprep.mubr.f32.mxu0 %v387
  %849 = vmatmul.mubr.f32.gmra.mxu0 %v81
  %v850 = vpop.f32.mrf.mxu0
  %v851 = vadd.f32 0.0, %v850
  %v852 = vpop.f32.mrf.mxu0
  %853 = vmatprep.mubr.f32.mxu0 %v390
  %854 = vmatmul.mubr.f32.gmra.mxu0 %v83
  %v855 = vpop.f32.mrf.mxu0
  %v856 = vadd.f32 0.0, %v855
  %v857 = vpop.f32.mrf.mxu0
  %858 = vmatprep.mubr.f32.mxu0 %v393
  %859 = vmatmul.mubr.f32.gmra.mxu0 %v85
  %v860 = vpop.f32.mrf.mxu0
  %v861 = vadd.f32 0.0, %v860
  %v862 = vpop.f32.mrf.mxu0
  %863 = vmatprep.mubr.f32.mxu0 %v396
  %864 = vmatmul.mubr.f32.gmra.mxu0 %v87
  %v865 = vpop.f32.mrf.mxu0
  %v866 = vadd.f32 0.0, %v865
  %v867 = vpop.f32.mrf.mxu0
  %868 = vmatprep.mubr.f32.mxu0 %v399
  %869 = vmatmul.mubr.f32.gmra.mxu0 %v89
  %v870 = vpop.f32.mrf.mxu0
  %v871 = vadd.f32 0.0, %v870
  %v872 = vpop.f32.mrf.mxu0
  %873 = vmatprep.mubr.f32.mxu0 %v402
  %874 = vmatmul.mubr.f32.gmra.mxu0 %v91
  %v875 = vpop.f32.mrf.mxu0
  %v876 = vadd.f32 0.0, %v875
  %v877 = vpop.f32.mrf.mxu0
  %878 = vmatprep.mubr.f32.mxu0 %v405
  %879 = vmatmul.mubr.f32.gmra.mxu0 %v93
  %v880 = vpop.f32.mrf.mxu0
  %v881 = vadd.f32 0.0, %v880
  %v882 = vpop.f32.mrf.mxu0
  %883 = vmatprep.mubr.f32.mxu0 %v408
  %884 = vmatmul.mubr.f32.gmra.mxu0 %v95
  %v885 = vpop.f32.mrf.mxu0
  %v886 = vadd.f32 0.0, %v885
  %v887 = vpop.f32.mrf.mxu0
  %888 = vmatprep.mubr.f32.mxu0 %v411
  %889 = vmatmul.mubr.f32.gmra.mxu0 %v97
  %v890 = vpop.f32.mrf.mxu0
  %v891 = vadd.f32 0.0, %v890
  %v892 = vpop.f32.mrf.mxu0
  %893 = vmatprep.mubr.f32.mxu0 %v414
  %894 = vmatmul.mubr.f32.gmra.mxu0 %v99
  %v895 = vpop.f32.mrf.mxu0
  %v896 = vadd.f32 0.0, %v895
  %v897 = vpop.f32.mrf.mxu0
  %898 = vmatprep.mubr.f32.mxu0 %v417
  %899 = vmatmul.mubr.f32.gmra.mxu0 %v101
  %v900 = vpop.f32.mrf.mxu0
  %v901 = vadd.f32 0.0, %v900
  %v902 = vpop.f32.mrf.mxu0
  %903 = vmatprep.mubr.f32.mxu0 %v420
  %904 = vmatmul.mubr.f32.gmra.mxu0 %v103
  %v905 = vpop.f32.mrf.mxu0
  %v906 = vadd.f32 0.0, %v905
  %v907 = vpop.f32.mrf.mxu0
  %908 = vmatprep.mubr.f32.mxu0 %v423
  %909 = vmatmul.mubr.f32.gmra.mxu0 %v105
  %v910 = vpop.f32.mrf.mxu0
  %v911 = vadd.f32 0.0, %v910
  %v912 = vpop.f32.mrf.mxu0
  %913 = vmatprep.mubr.f32.mxu0 %v426
  %914 = vmatmul.mubr.f32.gmra.mxu0 %v107
  %v915 = vpop.f32.mrf.mxu0
  %v916 = vadd.f32 0.0, %v915
  %v917 = vpop.f32.mrf.mxu0
  %918 = vmatprep.mubr.f32.mxu0 %v429
  %919 = vmatmul.mubr.f32.gmra.mxu0 %v109
  %v920 = vpop.f32.mrf.mxu0
  %v921 = vadd.f32 0.0, %v920
  %v922 = vpop.f32.mrf.mxu0
  %923 = vmatprep.mubr.f32.mxu0 %v432
  %924 = vmatmul.mubr.f32.gmra.mxu0 %v111
  %v925 = vpop.f32.mrf.mxu0
  %v926 = vadd.f32 0.0, %v925
  %v927 = vpop.f32.mrf.mxu0
  %928 = vmatprep.mubr.f32.mxu0 %v435
  %929 = vmatmul.mubr.f32.gmra.mxu0 %v113
  %v930 = vpop.f32.mrf.mxu0
  %v931 = vadd.f32 0.0, %v930
  %v932 = vpop.f32.mrf.mxu0
  %933 = vmatprep.mubr.f32.mxu0 %v438
  %934 = vmatmul.mubr.f32.gmra.mxu0 %v115
  %v935 = vpop.f32.mrf.mxu0
  %v936 = vadd.f32 0.0, %v935
  %v937 = vpop.f32.mrf.mxu0
  %938 = vmatprep.mubr.f32.mxu0 %v441
  %939 = vmatmul.mubr.f32.gmra.mxu0 %v117
  %v940 = vpop.f32.mrf.mxu0
  %v941 = vadd.f32 0.0, %v940
  %v942 = vpop.f32.mrf.mxu0
  %943 = vmatprep.mubr.f32.mxu0 %v444
  %944 = vmatmul.mubr.f32.gmra.mxu0 %v119
  %v945 = vpop.f32.mrf.mxu0
  %v946 = vadd.f32 0.0, %v945
  %v947 = vpop.f32.mrf.mxu0
  %948 = vmatprep.mubr.f32.mxu0 %v447
  %949 = vmatmul.mubr.f32.gmra.mxu0 %v121
  %v950 = vpop.f32.mrf.mxu0
  %v951 = vadd.f32 0.0, %v950
  %v952 = vpop.f32.mrf.mxu0
  %953 = vmatprep.mubr.f32.mxu0 %v450
  %954 = vmatmul.mubr.f32.gmra.mxu0 %v123
  %v955 = vpop.f32.mrf.mxu0
  %v956 = vadd.f32 0.0, %v955
  %v957 = vpop.f32.mrf.mxu0
  %958 = vmatprep.mubr.f32.mxu0 %v453
  %959 = vmatmul.mubr.f32.gmra.mxu0 %v125
  %v960 = vpop.f32.mrf.mxu0
  %v961 = vadd.f32 0.0, %v960
  %v962 = vpop.f32.mrf.mxu0
  %963 = vmatprep.mubr.f32.mxu0 %v456
  %964 = vmatmul.mubr.f32.gmra.mxu0 %v127
  %v965 = vpop.f32.mrf.mxu0
  %v966 = vadd.f32 0.0, %v965
  %v967 = vpop.f32.mrf.mxu0
  %968 = vmatprep.mubr.f32.mxu0 %v459
  %969 = vmatmul.mubr.f32.gmra.mxu0 %v129
  %v970 = vpop.f32.mrf.mxu0
  %v971 = vadd.f32 0.0, %v970
  %v972 = vpop.f32.mrf.mxu0
  %973 = vmatprep.mubr.f32.mxu0 %v462
  %974 = vmatmul.mubr.f32.gmra.mxu0 %v131
  %v975 = vpop.f32.mrf.mxu0
  %v976 = vadd.f32 0.0, %v975
  %v977 = vpop.f32.mrf.mxu0
  %978 = vmatprep.mubr.f32.mxu0 %v465
  %979 = vmatmul.mubr.f32.gmra.mxu0 %v133
  %v980 = vpop.f32.mrf.mxu0
  %v981 = vadd.f32 0.0, %v980
  %v982 = vpop.f32.mrf.mxu0
  %983 = vmatprep.mubr.f32.mxu0 %v468
  %984 = vmatmul.mubr.f32.gmra.mxu0 %v135
  %v985 = vpop.f32.mrf.mxu0
  %v986 = vadd.f32 0.0, %v985
  %v987 = vpop.f32.mrf.mxu0
  %988 = vmatprep.mubr.f32.mxu0 %v471
  %989 = vmatmul.mubr.f32.gmra.mxu0 %v137
  %v990 = vpop.f32.mrf.mxu0
  %v991 = vadd.f32 0.0, %v990
  %v992 = vpop.f32.mrf.mxu0
  %993 = vmatprep.mubr.f32.mxu0 %v474
  %994 = vmatmul.mubr.f32.gmra.mxu0 %v139
  %v995 = vpop.f32.mrf.mxu0
  %v996 = vadd.f32 0.0, %v995
  %v997 = vpop.f32.mrf.mxu0
  %998 = vmatprep.mubr.f32.mxu0 %v477
  %999 = vmatmul.mubr.f32.gmra.mxu0 %v141
  %v1000 = vpop.f32.mrf.mxu0
  %v1001 = vadd.f32 0.0, %v1000
  %v1002 = vpop.f32.mrf.mxu0
  %1003 = vmatprep.mubr.f32.mxu0 %v480
  %1004 = vmatmul.mubr.f32.gmra.mxu0 %v143
  %v1005 = vpop.f32.mrf.mxu0
  %v1006 = vadd.f32 0.0, %v1005
  %v1007 = vpop.f32.mrf.mxu0
  %1008 = vmatprep.mubr.f32.mxu0 %v483
  %1009 = vmatmul.mubr.f32.gmra.mxu0 %v145
  %v1010 = vpop.f32.mrf.mxu0
  %v1011 = vadd.f32 0.0, %v1010
  %v1012 = vpop.f32.mrf.mxu0
  %1013 = vmatprep.mubr.f32.mxu0 %v486
  %1014 = vmatmul.mubr.f32.gmra.mxu0 %v147
  %v1015 = vpop.f32.mrf.mxu0
  %v1016 = vadd.f32 0.0, %v1015
  %v1017 = vpop.f32.mrf.mxu0
  %1018 = vmatprep.mubr.f32.mxu0 %v489
  %1019 = vmatmul.mubr.f32.gmra.mxu0 %v149
  %v1020 = vpop.f32.mrf.mxu0
  %v1021 = vadd.f32 0.0, %v1020
  %v1022 = vpop.f32.mrf.mxu0
  %1023 = vmatprep.mubr.f32.mxu0 %v492
  %1024 = vmatmul.mubr.f32.gmra.mxu0 %v151
  %v1025 = vpop.f32.mrf.mxu0
  %v1026 = vadd.f32 0.0, %v1025
  %v1027 = vpop.f32.mrf.mxu0
  %1028 = vmatprep.mubr.f32.mxu0 %v495
  %1029 = vmatmul.mubr.f32.gmra.mxu0 %v153
  %v1030 = vpop.f32.mrf.mxu0
  %v1031 = vadd.f32 0.0, %v1030
  %v1032 = vpop.f32.mrf.mxu0
  %1033 = vmatprep.mubr.f32.mxu0 %v498
  %1034 = vmatmul.mubr.f32.gmra.mxu0 %v155
  %v1035 = vpop.f32.mrf.mxu0
  %v1036 = vadd.f32 0.0, %v1035
  %v1037 = vpop.f32.mrf.mxu0
  %1038 = vmatprep.mubr.f32.mxu0 %v501
  %1039 = vmatmul.mubr.f32.gmra.mxu0 %v157
  %v1040 = vpop.f32.mrf.mxu0
  %v1041 = vadd.f32 0.0, %v1040
  %v1042 = vpop.f32.mrf.mxu0
  %1043 = vmatprep.mubr.f32.mxu0 %v504
  %1044 = vmatmul.mubr.f32.gmra.mxu0 %v159
  %v1045 = vpop.f32.mrf.mxu0
  %v1046 = vadd.f32 0.0, %v1045
  %v1047 = vpop.f32.mrf.mxu0
  %1048 = vmatprep.mubr.f32.mxu0 %v507
  %1049 = vmatmul.mubr.f32.gmra.mxu0 %v161
  %v1050 = vpop.f32.mrf.mxu0
  %v1051 = vadd.f32 0.0, %v1050
  %v1052 = vpop.f32.mrf.mxu0
  %1053 = vmatprep.mubr.f32.mxu0 %v510
  %1054 = vmatmul.mubr.f32.gmra.mxu0 %v163
  %v1055 = vpop.f32.mrf.mxu0
  %v1056 = vadd.f32 0.0, %v1055
  %v1057 = vpop.f32.mrf.mxu0
  %1058 = vmatprep.mubr.f32.mxu0 %v513
  %1059 = vmatmul.mubr.f32.gmra.mxu0 %v165
  %v1060 = vpop.f32.mrf.mxu0
  %v1061 = vadd.f32 0.0, %v1060
  %v1062 = vpop.f32.mrf.mxu0
  %1063 = vmatprep.mubr.f32.mxu0 %v516
  %1064 = vmatmul.mubr.f32.gmra.mxu0 %v167
  %v1065 = vpop.f32.mrf.mxu0
  %v1066 = vadd.f32 0.0, %v1065
  %v1067 = vpop.f32.mrf.mxu0
  %1068 = vmatprep.mubr.f32.mxu0 %v519
  %1069 = vmatmul.mubr.f32.gmra.mxu0 %v169
  %v1070 = vpop.f32.mrf.mxu0
  %v1071 = vadd.f32 0.0, %v1070
  %v1072 = vpop.f32.mrf.mxu0
  %1073 = vmatprep.mubr.f32.mxu0 %v522
  %1074 = vmatmul.mubr.f32.gmra.mxu0 %v171
  %v1075 = vpop.f32.mrf.mxu0
  %v1076 = vadd.f32 0.0, %v1075
  %v1077 = vpop.f32.mrf.mxu0
  %1078 = vmatprep.mubr.f32.mxu0 %v525
  %1079 = vmatmul.mubr.f32.gmra.mxu0 %v173
  %v1080 = vpop.f32.mrf.mxu0
  %v1081 = vadd.f32 0.0, %v1080
  %v1082 = vpop.f32.mrf.mxu0
  %1083 = vmatprep.mubr.f32.mxu0 %v528
  %1084 = vmatmul.mubr.f32.gmra.mxu0 %v175
  %v1085 = vpop.f32.mrf.mxu0
  %v1086 = vadd.f32 0.0, %v1085
  %v1087 = vpop.f32.mrf.mxu0
  %1088 = vmatprep.mubr.f32.mxu0 %v531
  %1089 = vmatmul.mubr.f32.gmra.mxu0 %v177
  %v1090 = vpop.f32.mrf.mxu0
  %v1091 = vadd.f32 0.0, %v1090
  %v1092 = vpop.f32.mrf.mxu0
  %1093 = vmatprep.mubr.f32.mxu0 %v534
  %1094 = vmatmul.mubr.f32.gmra.mxu0 %v179
  %v1095 = vpop.f32.mrf.mxu0
  %v1096 = vadd.f32 0.0, %v1095
  %v1097 = vpop.f32.mrf.mxu0
  %1098 = vmatprep.mubr.f32.mxu0 %v537
  %1099 = vmatmul.mubr.f32.gmra.mxu0 %v181
  %v1100 = vpop.f32.mrf.mxu0
  %v1101 = vadd.f32 0.0, %v1100
  %v1102 = vpop.f32.mrf.mxu0
  %1103 = vmatprep.mubr.f32.mxu0 %v540
  %1104 = vmatmul.mubr.f32.gmra.mxu0 %v183
  %v1105 = vpop.f32.mrf.mxu0
  %v1106 = vadd.f32 0.0, %v1105
  %v1107 = vpop.f32.mrf.mxu0
  %1108 = vmatprep.mubr.f32.mxu0 %v543
  %1109 = vmatmul.mubr.f32.gmra.mxu0 %v185
  %v1110 = vpop.f32.mrf.mxu0
  %v1111 = vadd.f32 0.0, %v1110
  %v1112 = vpop.f32.mrf.mxu0
  %1113 = vmatprep.mubr.f32.mxu0 %v546
  %1114 = vmatmul.mubr.f32.gmra.mxu0 %v187
  %v1115 = vpop.f32.mrf.mxu0
  %v1116 = vadd.f32 0.0, %v1115
  %v1117 = vpop.f32.mrf.mxu0
  %1118 = vmatprep.mubr.f32.mxu0 %v549
  %1119 = vmatmul.mubr.f32.gmra.mxu0 %v189
  %v1120 = vpop.f32.mrf.mxu0
  %v1121 = vadd.f32 0.0, %v1120
  %v1122 = vpop.f32.mrf.mxu0
  %1123 = vmatprep.mubr.f32.mxu0 %v552
  %1124 = vmatmul.mubr.f32.gmra.mxu0 %v191
  %v1125 = vpop.f32.mrf.mxu0
  %v1126 = vadd.f32 0.0, %v1125
  %v1127 = vpop.f32.mrf.mxu0
  %1128 = vmatprep.mubr.f32.mxu0 %v555
  %1129 = vmatmul.mubr.f32.gmra.mxu0 %v193
  %v1130 = vpop.f32.mrf.mxu0
  %v1131 = vadd.f32 0.0, %v1130
  %v1132 = vpop.f32.mrf.mxu0
  %1133 = vmatprep.mubr.f32.mxu0 %v558
  %1134 = vmatmul.mubr.f32.gmra.mxu0 %v195
  %v1135 = vpop.f32.mrf.mxu0
  %v1136 = vadd.f32 0.0, %v1135
  %v1137 = vpop.f32.mrf.mxu0
  %1138 = vmatprep.mubr.f32.mxu0 %v561
  %1139 = vmatmul.mubr.f32.gmra.mxu0 %v197
  %v1140 = vpop.f32.mrf.mxu0
  %v1141 = vadd.f32 0.0, %v1140
  %v1142 = vpop.f32.mrf.mxu0
  %1143 = vmatprep.mubr.f32.mxu0 %v564
  %1144 = vmatmul.mubr.f32.gmra.mxu0 %v199
  %v1145 = vpop.f32.mrf.mxu0
  %v1146 = vadd.f32 0.0, %v1145
  %v1147 = vpop.f32.mrf.mxu0
  %1148 = vmatprep.mubr.f32.mxu0 %v567
  %1149 = vmatmul.mubr.f32.gmra.mxu0 %v201
  %v1150 = vpop.f32.mrf.mxu0
  %v1151 = vadd.f32 0.0, %v1150
  %v1152 = vpop.f32.mrf.mxu0
  %1153 = vmatprep.mubr.f32.mxu0 %v570
  %1154 = vmatmul.mubr.f32.gmra.mxu0 %v203
  %v1155 = vpop.f32.mrf.mxu0
  %v1156 = vadd.f32 0.0, %v1155
  %v1157 = vpop.f32.mrf.mxu0
  %1158 = vmatprep.mubr.f32.mxu0 %v573
  %1159 = vmatmul.mubr.f32.gmra.mxu0 %v205
  %v1160 = vpop.f32.mrf.mxu0
  %v1161 = vadd.f32 0.0, %v1160
  %v1162 = vpop.f32.mrf.mxu0
  %1163 = vmatprep.mubr.f32.mxu0 %v576
  %1164 = vmatmul.mubr.f32.gmra.mxu0 %v207
  %v1165 = vpop.f32.mrf.mxu0
  %v1166 = vadd.f32 0.0, %v1165
  %v1167 = vpop.f32.mrf.mxu0
  %1168 = vmatprep.mubr.f32.mxu0 %v579
  %1169 = vmatmul.mubr.f32.gmra.mxu0 %v209
  %v1170 = vpop.f32.mrf.mxu0
  %v1171 = vadd.f32 0.0, %v1170
  %v1172 = vpop.f32.mrf.mxu0
  %1173 = vmatprep.mubr.f32.mxu0 %v582
  %1174 = vmatmul.mubr.f32.gmra.mxu0 %v211
  %v1175 = vpop.f32.mrf.mxu0
  %v1176 = vadd.f32 0.0, %v1175
  %v1177 = vpop.f32.mrf.mxu0
  %1178 = vmatprep.mubr.f32.mxu0 %v585
  %1179 = vmatmul.mubr.f32.gmra.mxu0 %v213
  %v1180 = vpop.f32.mrf.mxu0
  %v1181 = vadd.f32 0.0, %v1180
  %v1182 = vpop.f32.mrf.mxu0
  %1183 = vmatprep.mubr.f32.mxu0 %v588
  %1184 = vmatmul.mubr.f32.gmra.mxu0 %v215
  %v1185 = vpop.f32.mrf.mxu0
  %v1186 = vadd.f32 0.0, %v1185
  %v1187 = vpop.f32.mrf.mxu0
  %1188 = vmatprep.mubr.f32.mxu0 %v591
  %1189 = vmatmul.mubr.f32.gmra.mxu0 %v217
  %v1190 = vpop.f32.mrf.mxu0
  %v1191 = vadd.f32 0.0, %v1190
  %v1192 = vpop.f32.mrf.mxu0
  %1193 = vmatprep.mubr.f32.mxu0 %v594
  %1194 = vmatmul.mubr.f32.gmra.mxu0 %v219
  %v1195 = vpop.f32.mrf.mxu0
  %v1196 = vadd.f32 0.0, %v1195
  %v1197 = vpop.f32.mrf.mxu0
  %1198 = vmatprep.mubr.f32.mxu0 %v597
  %1199 = vmatmul.mubr.f32.gmra.mxu0 %v221
  %v1200 = vpop.f32.mrf.mxu0
  %v1201 = vadd.f32 0.0, %v1200
  %v1202 = vpop.f32.mrf.mxu0
  %1203 = vmatprep.mubr.f32.mxu0 %v600
  %1204 = vmatmul.mubr.f32.gmra.mxu0 %v223
  %v1205 = vpop.f32.mrf.mxu0
  %v1206 = vadd.f32 0.0, %v1205
  %v1207 = vpop.f32.mrf.mxu0
  %1208 = vmatprep.mubr.f32.mxu0 %v603
  %1209 = vmatmul.mubr.f32.gmra.mxu0 %v225
  %v1210 = vpop.f32.mrf.mxu0
  %v1211 = vadd.f32 0.0, %v1210
  %v1212 = vpop.f32.mrf.mxu0
  %1213 = vmatprep.mubr.f32.mxu0 %v606
  %1214 = vmatmul.mubr.f32.gmra.mxu0 %v227
  %v1215 = vpop.f32.mrf.mxu0
  %v1216 = vadd.f32 0.0, %v1215
  %v1217 = vpop.f32.mrf.mxu0
  %1218 = vmatprep.mubr.f32.mxu0 %v609
  %1219 = vmatmul.mubr.f32.gmra.mxu0 %v229
  %v1220 = vpop.f32.mrf.mxu0
  %v1221 = vadd.f32 0.0, %v1220
  %v1222 = vpop.f32.mrf.mxu0
  %1223 = vmatprep.mubr.f32.mxu0 %v612
  %1224 = vmatmul.mubr.f32.gmra.mxu0 %v231
  %v1225 = vpop.f32.mrf.mxu0
  %v1226 = vadd.f32 0.0, %v1225
  %v1227 = vpop.f32.mrf.mxu0
  %1228 = vmatprep.mubr.f32.mxu0 %v615
  %1229 = vmatmul.mubr.f32.gmra.mxu0 %v233
  %v1230 = vpop.f32.mrf.mxu0
  %v1231 = vadd.f32 0.0, %v1230
  %v1232 = vpop.f32.mrf.mxu0
  %1233 = vmatprep.mubr.f32.mxu0 %v618
  %1234 = vmatmul.mubr.f32.gmra.mxu0 %v259
  %v1235 = vpop.f32.mrf.mxu0
  %v1236 = vadd.f32 0.0, %v1235
  %v1237 = vpop.f32.mrf.mxu0
  %1238 = vmatprep.mubr.f32.mxu0 %v621
  %1239 = vmatmul.mubr.f32.gmra.mxu0 %v261
  %v1240 = vpop.f32.mrf.mxu0
  %v1241 = vadd.f32 0.0, %v1240
  %v1242 = vpop.f32.mrf.mxu0
  %1243 = vmatprep.mubr.f32.mxu0 %v624
  %1244 = vmatmul.mubr.f32.gmra.mxu0 %v263
  %v1245 = vpop.f32.mrf.mxu0
  %v1246 = vadd.f32 0.0, %v1245
  %v1247 = vpop.f32.mrf.mxu0
  %1248 = vmatprep.mubr.f32.mxu0 %v627
  %1249 = vmatmul.mubr.f32.gmra.mxu0 %v265
  %v1250 = vpop.f32.mrf.mxu0
  %v1251 = vadd.f32 0.0, %v1250
  %v1252 = vpop.f32.mrf.mxu0
  %1253 = vdwg.mxu0
  %v1255 = vsel %vm292, %v12, 0
  %v1258 = vsel %vm292, %v14, 0
  %v1261 = vsel %vm292, %v16, 0
  %v1264 = vsel %vm292, %v18, 0
  %1266 = vmatprep.subr.mxu0 0.0
  %1267 = vmatpush1.msra.mxu0 %v250
  %1268 = vmatprep.subr.mxu0 0.0
  %1269 = vmatpush1.msra.mxu0 %v249
  %1270 = vmatprep.subr.mxu0 0.0
  %1271 = vmatpush1.msra.mxu0 %v248
  %1272 = vmatprep.subr.mxu0 0.0
  %1273 = vmatpush1.msra.mxu0 %v247
  %1274 = vmatprep.subr.mxu0 0.0
  %1275 = vmatpush1.msra.mxu0 %v246
  %1276 = vmatprep.subr.mxu0 0.0
  %1277 = vmatpush1.msra.mxu0 %v245
  %1278 = vmatprep.subr.mxu0 0.0
  %1279 = vmatpush1.msra.mxu0 %v244
  %1280 = vmatprep.subr.mxu0 0.0
  %1281 = vmatpush1.msra.mxu0 %v243
  %1282 = vmatprep.subr.mxu0 0.0
  %1283 = vmatpush1.msra.mxu0 %v242
  %1284 = vmatprep.subr.mxu0 0.0
  %1285 = vmatpush1.msra.mxu0 %v241
  %1286 = vmatprep.subr.mxu0 0.0
  %1287 = vmatpush1.msra.mxu0 %v240
  %1288 = vmatprep.subr.mxu0 0.0
  %1289 = vmatpush1.msra.mxu0 %v239
  %1290 = vmatprep.subr.mxu0 0.0
  %1291 = vmatpush1.msra.mxu0 %v238
  %1292 = vmatprep.subr.mxu0 0.0
  %1293 = vmatpush1.msra.mxu0 %v237
  %1294 = vmatprep.subr.mxu0 0.0
  %1295 = vmatpush1.msra.mxu0 %v236
  %1296 = vmatprep.subr.mxu0 0.0
  %1297 = vmatpush1.msra.mxu0 %v235
  %1298 = vmatprep.subr.mxu0 0.0
  %1299 = vmatpush2.msra.mxu0 0.0
  %1300 = vmatprep.subr.mxu0 0.0
  %1301 = vmatpush2.msra.mxu0 0.0
  %1302 = vmatprep.subr.mxu0 0.0
  %1303 = vmatpush2.msra.mxu0 0.0
  %1304 = vmatprep.subr.mxu0 0.0
  %1305 = vmatpush2.msra.mxu0 0.0
  %1306 = vmatprep.subr.mxu0 0.0
  %1307 = vmatpush2.msra.mxu0 0.0
  %1308 = vmatprep.subr.mxu0 0.0
  %1309 = vmatpush2.msra.mxu0 0.0
  %1310 = vmatprep.subr.mxu0 0.0
  %1311 = vmatpush2.msra.mxu0 0.0
  %1312 = vmatprep.subr.mxu0 0.0
  %1313 = vmatpush2.msra.mxu0 0.0
  %1314 = vmatprep.subr.mxu0 0.0
  %1315 = vmatpush2.msra.mxu0 %v258
  %1316 = vmatprep.subr.mxu0 0.0
  %1317 = vmatpush2.msra.mxu0 %v257
  %1318 = vmatprep.subr.mxu0 0.0
  %1319 = vmatpush2.msra.mxu0 %v256
  %1320 = vmatprep.subr.mxu0 0.0
  %1321 = vmatpush2.msra.mxu0 %v255
  %1322 = vmatprep.subr.mxu0 0.0
  %1323 = vmatpush2.msra.mxu0 %v254
  %1324 = vmatprep.subr.mxu0 0.0
  %1325 = vmatpush2.msra.mxu0 %v253
  %1326 = vmatprep.subr.mxu0 0.0
  %1327 = vmatpush2.msra.mxu0 %v252
  %1328 = vmatprep.subr.mxu0 0.0
  %1329 = vmatpush2.msra.mxu0 %v251
  %1330 = vmatprep.mubr.f32.mxu0 %v1255
  %1331 = vmatmul.mubr.f32.gmra.mxu0 %v11
  %v1332 = vpop.f32.mrf.mxu0
  %v1333 = vadd.f32 %v696, %v1332
  %v1334 = vpop.f32.mrf.mxu0
  %1335 = vmatprep.mubr.f32.mxu0 %v1258
  %1336 = vmatmul.mubr.f32.gmra.mxu0 %v13
  %v1337 = vpop.f32.mrf.mxu0
  %v1338 = vadd.f32 %v701, %v1337
  %v1339 = vpop.f32.mrf.mxu0
  %1340 = vmatprep.mubr.f32.mxu0 %v1261
  %1341 = vmatmul.mubr.f32.gmra.mxu0 %v15
  %v1342 = vpop.f32.mrf.mxu0
  %v1343 = vadd.f32 %v706, %v1342
  %v1344 = vpop.f32.mrf.mxu0
  %1345 = vmatprep.mubr.f32.mxu0 %v1264
  %1346 = vmatmul.mubr.f32.gmra.mxu0 %v17
  %v1347 = vpop.f32.mrf.mxu0
  %v1348 = vadd.f32 %v711, %v1347
  %v1349 = vpop.f32.mrf.mxu0
  %1350 = vmatprep.mubr.f32.mxu0 %v294
  %1351 = vmatmul.mubr.f32.gmra.mxu0 %v19
  %v1352 = vpop.f32.mrf.mxu0
  %v1353 = vadd.f32 %v716, %v1352
  %v1354 = vpop.f32.mrf.mxu0
  %1355 = vmatprep.mubr.f32.mxu0 %v297
  %1356 = vmatmul.mubr.f32.gmra.mxu0 %v21
  %v1357 = vpop.f32.mrf.mxu0
  %v1358 = vadd.f32 %v721, %v1357
  %v1359 = vpop.f32.mrf.mxu0
  %1360 = vmatprep.mubr.f32.mxu0 %v300
  %1361 = vmatmul.mubr.f32.gmra.mxu0 %v23
  %v1362 = vpop.f32.mrf.mxu0
  %v1363 = vadd.f32 %v726, %v1362
  %v1364 = vpop.f32.mrf.mxu0
  %1365 = vmatprep.mubr.f32.mxu0 %v303
  %1366 = vmatmul.mubr.f32.gmra.mxu0 %v25
  %v1367 = vpop.f32.mrf.mxu0
  %v1368 = vadd.f32 %v731, %v1367
  %v1369 = vpop.f32.mrf.mxu0
  %1370 = vmatprep.mubr.f32.mxu0 %v306
  %1371 = vmatmul.mubr.f32.gmra.mxu0 %v27
  %v1372 = vpop.f32.mrf.mxu0
  %v1373 = vadd.f32 %v736, %v1372
  %v1374 = vpop.f32.mrf.mxu0
  %1375 = vmatprep.mubr.f32.mxu0 %v309
  %1376 = vmatmul.mubr.f32.gmra.mxu0 %v29
  %v1377 = vpop.f32.mrf.mxu0
  %v1378 = vadd.f32 %v741, %v1377
  %v1379 = vpop.f32.mrf.mxu0
  %1380 = vmatprep.mubr.f32.mxu0 %v312
  %1381 = vmatmul.mubr.f32.gmra.mxu0 %v31
  %v1382 = vpop.f32.mrf.mxu0
  %v1383 = vadd.f32 %v746, %v1382
  %v1384 = vpop.f32.mrf.mxu0
  %1385 = vmatprep.mubr.f32.mxu0 %v315
  %1386 = vmatmul.mubr.f32.gmra.mxu0 %v33
  %v1387 = vpop.f32.mrf.mxu0
  %v1388 = vadd.f32 %v751, %v1387
  %v1389 = vpop.f32.mrf.mxu0
  %1390 = vmatprep.mubr.f32.mxu0 %v318
  %1391 = vmatmul.mubr.f32.gmra.mxu0 %v35
  %v1392 = vpop.f32.mrf.mxu0
  %v1393 = vadd.f32 %v756, %v1392
  %v1394 = vpop.f32.mrf.mxu0
  %1395 = vmatprep.mubr.f32.mxu0 %v321
  %1396 = vmatmul.mubr.f32.gmra.mxu0 %v37
  %v1397 = vpop.f32.mrf.mxu0
  %v1398 = vadd.f32 %v761, %v1397
  %v1399 = vpop.f32.mrf.mxu0
  %1400 = vmatprep.mubr.f32.mxu0 %v324
  %1401 = vmatmul.mubr.f32.gmra.mxu0 %v39
  %v1402 = vpop.f32.mrf.mxu0
  %v1403 = vadd.f32 %v766, %v1402
  %v1404 = vpop.f32.mrf.mxu0
  %1405 = vmatprep.mubr.f32.mxu0 %v327
  %1406 = vmatmul.mubr.f32.gmra.mxu0 %v41
  %v1407 = vpop.f32.mrf.mxu0
  %v1408 = vadd.f32 %v771, %v1407
  %v1409 = vpop.f32.mrf.mxu0
  %1410 = vmatprep.mubr.f32.mxu0 %v330
  %1411 = vmatmul.mubr.f32.gmra.mxu0 %v43
  %v1412 = vpop.f32.mrf.mxu0
  %v1413 = vadd.f32 %v776, %v1412
  %v1414 = vpop.f32.mrf.mxu0
  %1415 = vmatprep.mubr.f32.mxu0 %v333
  %1416 = vmatmul.mubr.f32.gmra.mxu0 %v45
  %v1417 = vpop.f32.mrf.mxu0
  %v1418 = vadd.f32 %v781, %v1417
  %v1419 = vpop.f32.mrf.mxu0
  %1420 = vmatprep.mubr.f32.mxu0 %v336
  %1421 = vmatmul.mubr.f32.gmra.mxu0 %v47
  %v1422 = vpop.f32.mrf.mxu0
  %v1423 = vadd.f32 %v786, %v1422
  %v1424 = vpop.f32.mrf.mxu0
  %1425 = vmatprep.mubr.f32.mxu0 %v339
  %1426 = vmatmul.mubr.f32.gmra.mxu0 %v49
  %v1427 = vpop.f32.mrf.mxu0
  %v1428 = vadd.f32 %v791, %v1427
  %v1429 = vpop.f32.mrf.mxu0
  %1430 = vmatprep.mubr.f32.mxu0 %v342
  %1431 = vmatmul.mubr.f32.gmra.mxu0 %v51
  %v1432 = vpop.f32.mrf.mxu0
  %v1433 = vadd.f32 %v796, %v1432
  %v1434 = vpop.f32.mrf.mxu0
  %1435 = vmatprep.mubr.f32.mxu0 %v345
  %1436 = vmatmul.mubr.f32.gmra.mxu0 %v53
  %v1437 = vpop.f32.mrf.mxu0
  %v1438 = vadd.f32 %v801, %v1437
  %v1439 = vpop.f32.mrf.mxu0
  %1440 = vmatprep.mubr.f32.mxu0 %v348
  %1441 = vmatmul.mubr.f32.gmra.mxu0 %v55
  %v1442 = vpop.f32.mrf.mxu0
  %v1443 = vadd.f32 %v806, %v1442
  %v1444 = vpop.f32.mrf.mxu0
  %1445 = vmatprep.mubr.f32.mxu0 %v351
  %1446 = vmatmul.mubr.f32.gmra.mxu0 %v57
  %v1447 = vpop.f32.mrf.mxu0
  %v1448 = vadd.f32 %v811, %v1447
  %v1449 = vpop.f32.mrf.mxu0
  %1450 = vmatprep.mubr.f32.mxu0 %v354
  %1451 = vmatmul.mubr.f32.gmra.mxu0 %v59
  %v1452 = vpop.f32.mrf.mxu0
  %v1453 = vadd.f32 %v816, %v1452
  %v1454 = vpop.f32.mrf.mxu0
  %1455 = vmatprep.mubr.f32.mxu0 %v357
  %1456 = vmatmul.mubr.f32.gmra.mxu0 %v61
  %v1457 = vpop.f32.mrf.mxu0
  %v1458 = vadd.f32 %v821, %v1457
  %v1459 = vpop.f32.mrf.mxu0
  %1460 = vmatprep.mubr.f32.mxu0 %v360
  %1461 = vmatmul.mubr.f32.gmra.mxu0 %v63
  %v1462 = vpop.f32.mrf.mxu0
  %v1463 = vadd.f32 %v826, %v1462
  %v1464 = vpop.f32.mrf.mxu0
  %1465 = vmatprep.mubr.f32.mxu0 %v363
  %1466 = vmatmul.mubr.f32.gmra.mxu0 %v65
  %v1467 = vpop.f32.mrf.mxu0
  %v1468 = vadd.f32 %v831, %v1467
  %v1469 = vpop.f32.mrf.mxu0
  %1470 = vmatprep.mubr.f32.mxu0 %v366
  %1471 = vmatmul.mubr.f32.gmra.mxu0 %v67
  %v1472 = vpop.f32.mrf.mxu0
  %v1473 = vadd.f32 %v836, %v1472
  %v1474 = vpop.f32.mrf.mxu0
  %1475 = vmatprep.mubr.f32.mxu0 %v369
  %1476 = vmatmul.mubr.f32.gmra.mxu0 %v69
  %v1477 = vpop.f32.mrf.mxu0
  %v1478 = vadd.f32 %v841, %v1477
  %v1479 = vpop.f32.mrf.mxu0
  %1480 = vmatprep.mubr.f32.mxu0 %v372
  %1481 = vmatmul.mubr.f32.gmra.mxu0 %v71
  %v1482 = vpop.f32.mrf.mxu0
  %v1483 = vadd.f32 %v846, %v1482
  %v1484 = vpop.f32.mrf.mxu0
  %1485 = vmatprep.mubr.f32.mxu0 %v375
  %1486 = vmatmul.mubr.f32.gmra.mxu0 %v73
  %v1487 = vpop.f32.mrf.mxu0
  %v1488 = vadd.f32 %v851, %v1487
  %v1489 = vpop.f32.mrf.mxu0
  %1490 = vmatprep.mubr.f32.mxu0 %v378
  %1491 = vmatmul.mubr.f32.gmra.mxu0 %v75
  %v1492 = vpop.f32.mrf.mxu0
  %v1493 = vadd.f32 %v856, %v1492
  %v1494 = vpop.f32.mrf.mxu0
  %1495 = vmatprep.mubr.f32.mxu0 %v381
  %1496 = vmatmul.mubr.f32.gmra.mxu0 %v77
  %v1497 = vpop.f32.mrf.mxu0
  %v1498 = vadd.f32 %v861, %v1497
  %v1499 = vpop.f32.mrf.mxu0
  %1500 = vmatprep.mubr.f32.mxu0 %v384
  %1501 = vmatmul.mubr.f32.gmra.mxu0 %v79
  %v1502 = vpop.f32.mrf.mxu0
  %v1503 = vadd.f32 %v866, %v1502
  %v1504 = vpop.f32.mrf.mxu0
  %1505 = vmatprep.mubr.f32.mxu0 %v387
  %1506 = vmatmul.mubr.f32.gmra.mxu0 %v81
  %v1507 = vpop.f32.mrf.mxu0
  %v1508 = vadd.f32 %v871, %v1507
  %v1509 = vpop.f32.mrf.mxu0
  %1510 = vmatprep.mubr.f32.mxu0 %v390
  %1511 = vmatmul.mubr.f32.gmra.mxu0 %v83
  %v1512 = vpop.f32.mrf.mxu0
  %v1513 = vadd.f32 %v876, %v1512
  %v1514 = vpop.f32.mrf.mxu0
  %1515 = vmatprep.mubr.f32.mxu0 %v393
  %1516 = vmatmul.mubr.f32.gmra.mxu0 %v85
  %v1517 = vpop.f32.mrf.mxu0
  %v1518 = vadd.f32 %v881, %v1517
  %v1519 = vpop.f32.mrf.mxu0
  %1520 = vmatprep.mubr.f32.mxu0 %v396
  %1521 = vmatmul.mubr.f32.gmra.mxu0 %v87
  %v1522 = vpop.f32.mrf.mxu0
  %v1523 = vadd.f32 %v886, %v1522
  %v1524 = vpop.f32.mrf.mxu0
  %1525 = vmatprep.mubr.f32.mxu0 %v399
  %1526 = vmatmul.mubr.f32.gmra.mxu0 %v89
  %v1527 = vpop.f32.mrf.mxu0
  %v1528 = vadd.f32 %v891, %v1527
  %v1529 = vpop.f32.mrf.mxu0
  %1530 = vmatprep.mubr.f32.mxu0 %v402
  %1531 = vmatmul.mubr.f32.gmra.mxu0 %v91
  %v1532 = vpop.f32.mrf.mxu0
  %v1533 = vadd.f32 %v896, %v1532
  %v1534 = vpop.f32.mrf.mxu0
  %1535 = vmatprep.mubr.f32.mxu0 %v405
  %1536 = vmatmul.mubr.f32.gmra.mxu0 %v93
  %v1537 = vpop.f32.mrf.mxu0
  %v1538 = vadd.f32 %v901, %v1537
  %v1539 = vpop.f32.mrf.mxu0
  %1540 = vmatprep.mubr.f32.mxu0 %v408
  %1541 = vmatmul.mubr.f32.gmra.mxu0 %v95
  %v1542 = vpop.f32.mrf.mxu0
  %v1543 = vadd.f32 %v906, %v1542
  %v1544 = vpop.f32.mrf.mxu0
  %1545 = vmatprep.mubr.f32.mxu0 %v411
  %1546 = vmatmul.mubr.f32.gmra.mxu0 %v97
  %v1547 = vpop.f32.mrf.mxu0
  %v1548 = vadd.f32 %v911, %v1547
  %v1549 = vpop.f32.mrf.mxu0
  %1550 = vmatprep.mubr.f32.mxu0 %v414
  %1551 = vmatmul.mubr.f32.gmra.mxu0 %v99
  %v1552 = vpop.f32.mrf.mxu0
  %v1553 = vadd.f32 %v916, %v1552
  %v1554 = vpop.f32.mrf.mxu0
  %1555 = vmatprep.mubr.f32.mxu0 %v417
  %1556 = vmatmul.mubr.f32.gmra.mxu0 %v101
  %v1557 = vpop.f32.mrf.mxu0
  %v1558 = vadd.f32 %v921, %v1557
  %v1559 = vpop.f32.mrf.mxu0
  %1560 = vmatprep.mubr.f32.mxu0 %v420
  %1561 = vmatmul.mubr.f32.gmra.mxu0 %v103
  %v1562 = vpop.f32.mrf.mxu0
  %v1563 = vadd.f32 %v926, %v1562
  %v1564 = vpop.f32.mrf.mxu0
  %1565 = vmatprep.mubr.f32.mxu0 %v423
  %1566 = vmatmul.mubr.f32.gmra.mxu0 %v105
  %v1567 = vpop.f32.mrf.mxu0
  %v1568 = vadd.f32 %v931, %v1567
  %v1569 = vpop.f32.mrf.mxu0
  %1570 = vmatprep.mubr.f32.mxu0 %v426
  %1571 = vmatmul.mubr.f32.gmra.mxu0 %v107
  %v1572 = vpop.f32.mrf.mxu0
  %v1573 = vadd.f32 %v936, %v1572
  %v1574 = vpop.f32.mrf.mxu0
  %1575 = vmatprep.mubr.f32.mxu0 %v429
  %1576 = vmatmul.mubr.f32.gmra.mxu0 %v109
  %v1577 = vpop.f32.mrf.mxu0
  %v1578 = vadd.f32 %v941, %v1577
  %v1579 = vpop.f32.mrf.mxu0
  %1580 = vmatprep.mubr.f32.mxu0 %v432
  %1581 = vmatmul.mubr.f32.gmra.mxu0 %v111
  %v1582 = vpop.f32.mrf.mxu0
  %v1583 = vadd.f32 %v946, %v1582
  %v1584 = vpop.f32.mrf.mxu0
  %1585 = vmatprep.mubr.f32.mxu0 %v435
  %1586 = vmatmul.mubr.f32.gmra.mxu0 %v113
  %v1587 = vpop.f32.mrf.mxu0
  %v1588 = vadd.f32 %v951, %v1587
  %v1589 = vpop.f32.mrf.mxu0
  %1590 = vmatprep.mubr.f32.mxu0 %v438
  %1591 = vmatmul.mubr.f32.gmra.mxu0 %v115
  %v1592 = vpop.f32.mrf.mxu0
  %v1593 = vadd.f32 %v956, %v1592
  %v1594 = vpop.f32.mrf.mxu0
  %1595 = vmatprep.mubr.f32.mxu0 %v441
  %1596 = vmatmul.mubr.f32.gmra.mxu0 %v117
  %v1597 = vpop.f32.mrf.mxu0
  %v1598 = vadd.f32 %v961, %v1597
  %v1599 = vpop.f32.mrf.mxu0
  %1600 = vmatprep.mubr.f32.mxu0 %v444
  %1601 = vmatmul.mubr.f32.gmra.mxu0 %v119
  %v1602 = vpop.f32.mrf.mxu0
  %v1603 = vadd.f32 %v966, %v1602
  %v1604 = vpop.f32.mrf.mxu0
  %1605 = vmatprep.mubr.f32.mxu0 %v447
  %1606 = vmatmul.mubr.f32.gmra.mxu0 %v121
  %v1607 = vpop.f32.mrf.mxu0
  %v1608 = vadd.f32 %v971, %v1607
  %v1609 = vpop.f32.mrf.mxu0
  %1610 = vmatprep.mubr.f32.mxu0 %v450
  %1611 = vmatmul.mubr.f32.gmra.mxu0 %v123
  %v1612 = vpop.f32.mrf.mxu0
  %v1613 = vadd.f32 %v976, %v1612
  %v1614 = vpop.f32.mrf.mxu0
  %1615 = vmatprep.mubr.f32.mxu0 %v453
  %1616 = vmatmul.mubr.f32.gmra.mxu0 %v125
  %v1617 = vpop.f32.mrf.mxu0
  %v1618 = vadd.f32 %v981, %v1617
  %v1619 = vpop.f32.mrf.mxu0
  %1620 = vmatprep.mubr.f32.mxu0 %v456
  %1621 = vmatmul.mubr.f32.gmra.mxu0 %v127
  %v1622 = vpop.f32.mrf.mxu0
  %v1623 = vadd.f32 %v986, %v1622
  %v1624 = vpop.f32.mrf.mxu0
  %1625 = vmatprep.mubr.f32.mxu0 %v459
  %1626 = vmatmul.mubr.f32.gmra.mxu0 %v129
  %v1627 = vpop.f32.mrf.mxu0
  %v1628 = vadd.f32 %v991, %v1627
  %v1629 = vpop.f32.mrf.mxu0
  %1630 = vmatprep.mubr.f32.mxu0 %v462
  %1631 = vmatmul.mubr.f32.gmra.mxu0 %v131
  %v1632 = vpop.f32.mrf.mxu0
  %v1633 = vadd.f32 %v996, %v1632
  %v1634 = vpop.f32.mrf.mxu0
  %1635 = vmatprep.mubr.f32.mxu0 %v465
  %1636 = vmatmul.mubr.f32.gmra.mxu0 %v133
  %v1637 = vpop.f32.mrf.mxu0
  %v1638 = vadd.f32 %v1001, %v1637
  %v1639 = vpop.f32.mrf.mxu0
  %1640 = vmatprep.mubr.f32.mxu0 %v468
  %1641 = vmatmul.mubr.f32.gmra.mxu0 %v135
  %v1642 = vpop.f32.mrf.mxu0
  %v1643 = vadd.f32 %v1006, %v1642
  %v1644 = vpop.f32.mrf.mxu0
  %1645 = vmatprep.mubr.f32.mxu0 %v471
  %1646 = vmatmul.mubr.f32.gmra.mxu0 %v137
  %v1647 = vpop.f32.mrf.mxu0
  %v1648 = vadd.f32 %v1011, %v1647
  %v1649 = vpop.f32.mrf.mxu0
  %1650 = vmatprep.mubr.f32.mxu0 %v474
  %1651 = vmatmul.mubr.f32.gmra.mxu0 %v139
  %v1652 = vpop.f32.mrf.mxu0
  %v1653 = vadd.f32 %v1016, %v1652
  %v1654 = vpop.f32.mrf.mxu0
  %1655 = vmatprep.mubr.f32.mxu0 %v477
  %1656 = vmatmul.mubr.f32.gmra.mxu0 %v141
  %v1657 = vpop.f32.mrf.mxu0
  %v1658 = vadd.f32 %v1021, %v1657
  %v1659 = vpop.f32.mrf.mxu0
  %1660 = vmatprep.mubr.f32.mxu0 %v480
  %1661 = vmatmul.mubr.f32.gmra.mxu0 %v143
  %v1662 = vpop.f32.mrf.mxu0
  %v1663 = vadd.f32 %v1026, %v1662
  %v1664 = vpop.f32.mrf.mxu0
  %1665 = vmatprep.mubr.f32.mxu0 %v483
  %1666 = vmatmul.mubr.f32.gmra.mxu0 %v145
  %v1667 = vpop.f32.mrf.mxu0
  %v1668 = vadd.f32 %v1031, %v1667
  %v1669 = vpop.f32.mrf.mxu0
  %1670 = vmatprep.mubr.f32.mxu0 %v486
  %1671 = vmatmul.mubr.f32.gmra.mxu0 %v147
  %v1672 = vpop.f32.mrf.mxu0
  %v1673 = vadd.f32 %v1036, %v1672
  %v1674 = vpop.f32.mrf.mxu0
  %1675 = vmatprep.mubr.f32.mxu0 %v489
  %1676 = vmatmul.mubr.f32.gmra.mxu0 %v149
  %v1677 = vpop.f32.mrf.mxu0
  %v1678 = vadd.f32 %v1041, %v1677
  %v1679 = vpop.f32.mrf.mxu0
  %1680 = vmatprep.mubr.f32.mxu0 %v492
  %1681 = vmatmul.mubr.f32.gmra.mxu0 %v151
  %v1682 = vpop.f32.mrf.mxu0
  %v1683 = vadd.f32 %v1046, %v1682
  %v1684 = vpop.f32.mrf.mxu0
  %1685 = vmatprep.mubr.f32.mxu0 %v495
  %1686 = vmatmul.mubr.f32.gmra.mxu0 %v153
  %v1687 = vpop.f32.mrf.mxu0
  %v1688 = vadd.f32 %v1051, %v1687
  %v1689 = vpop.f32.mrf.mxu0
  %1690 = vmatprep.mubr.f32.mxu0 %v498
  %1691 = vmatmul.mubr.f32.gmra.mxu0 %v155
  %v1692 = vpop.f32.mrf.mxu0
  %v1693 = vadd.f32 %v1056, %v1692
  %v1694 = vpop.f32.mrf.mxu0
  %1695 = vmatprep.mubr.f32.mxu0 %v501
  %1696 = vmatmul.mubr.f32.gmra.mxu0 %v157
  %v1697 = vpop.f32.mrf.mxu0
  %v1698 = vadd.f32 %v1061, %v1697
  %v1699 = vpop.f32.mrf.mxu0
  %1700 = vmatprep.mubr.f32.mxu0 %v504
  %1701 = vmatmul.mubr.f32.gmra.mxu0 %v159
  %v1702 = vpop.f32.mrf.mxu0
  %v1703 = vadd.f32 %v1066, %v1702
  %v1704 = vpop.f32.mrf.mxu0
  %1705 = vmatprep.mubr.f32.mxu0 %v507
  %1706 = vmatmul.mubr.f32.gmra.mxu0 %v161
  %v1707 = vpop.f32.mrf.mxu0
  %v1708 = vadd.f32 %v1071, %v1707
  %v1709 = vpop.f32.mrf.mxu0
  %1710 = vmatprep.mubr.f32.mxu0 %v510
  %1711 = vmatmul.mubr.f32.gmra.mxu0 %v163
  %v1712 = vpop.f32.mrf.mxu0
  %v1713 = vadd.f32 %v1076, %v1712
  %v1714 = vpop.f32.mrf.mxu0
  %1715 = vmatprep.mubr.f32.mxu0 %v513
  %1716 = vmatmul.mubr.f32.gmra.mxu0 %v165
  %v1717 = vpop.f32.mrf.mxu0
  %v1718 = vadd.f32 %v1081, %v1717
  %v1719 = vpop.f32.mrf.mxu0
  %1720 = vmatprep.mubr.f32.mxu0 %v516
  %1721 = vmatmul.mubr.f32.gmra.mxu0 %v167
  %v1722 = vpop.f32.mrf.mxu0
  %v1723 = vadd.f32 %v1086, %v1722
  %v1724 = vpop.f32.mrf.mxu0
  %1725 = vmatprep.mubr.f32.mxu0 %v519
  %1726 = vmatmul.mubr.f32.gmra.mxu0 %v169
  %v1727 = vpop.f32.mrf.mxu0
  %v1728 = vadd.f32 %v1091, %v1727
  %v1729 = vpop.f32.mrf.mxu0
  %1730 = vmatprep.mubr.f32.mxu0 %v522
  %1731 = vmatmul.mubr.f32.gmra.mxu0 %v171
  %v1732 = vpop.f32.mrf.mxu0
  %v1733 = vadd.f32 %v1096, %v1732
  %v1734 = vpop.f32.mrf.mxu0
  %1735 = vmatprep.mubr.f32.mxu0 %v525
  %1736 = vmatmul.mubr.f32.gmra.mxu0 %v173
  %v1737 = vpop.f32.mrf.mxu0
  %v1738 = vadd.f32 %v1101, %v1737
  %v1739 = vpop.f32.mrf.mxu0
  %1740 = vmatprep.mubr.f32.mxu0 %v528
  %1741 = vmatmul.mubr.f32.gmra.mxu0 %v175
  %v1742 = vpop.f32.mrf.mxu0
  %v1743 = vadd.f32 %v1106, %v1742
  %v1744 = vpop.f32.mrf.mxu0
  %1745 = vmatprep.mubr.f32.mxu0 %v531
  %1746 = vmatmul.mubr.f32.gmra.mxu0 %v177
  %v1747 = vpop.f32.mrf.mxu0
  %v1748 = vadd.f32 %v1111, %v1747
  %v1749 = vpop.f32.mrf.mxu0
  %1750 = vmatprep.mubr.f32.mxu0 %v534
  %1751 = vmatmul.mubr.f32.gmra.mxu0 %v179
  %v1752 = vpop.f32.mrf.mxu0
  %v1753 = vadd.f32 %v1116, %v1752
  %v1754 = vpop.f32.mrf.mxu0
  %1755 = vmatprep.mubr.f32.mxu0 %v537
  %1756 = vmatmul.mubr.f32.gmra.mxu0 %v181
  %v1757 = vpop.f32.mrf.mxu0
  %v1758 = vadd.f32 %v1121, %v1757
  %v1759 = vpop.f32.mrf.mxu0
  %1760 = vmatprep.mubr.f32.mxu0 %v540
  %1761 = vmatmul.mubr.f32.gmra.mxu0 %v183
  %v1762 = vpop.f32.mrf.mxu0
  %v1763 = vadd.f32 %v1126, %v1762
  %v1764 = vpop.f32.mrf.mxu0
  %1765 = vmatprep.mubr.f32.mxu0 %v543
  %1766 = vmatmul.mubr.f32.gmra.mxu0 %v185
  %v1767 = vpop.f32.mrf.mxu0
  %v1768 = vadd.f32 %v1131, %v1767
  %v1769 = vpop.f32.mrf.mxu0
  %1770 = vmatprep.mubr.f32.mxu0 %v546
  %1771 = vmatmul.mubr.f32.gmra.mxu0 %v187
  %v1772 = vpop.f32.mrf.mxu0
  %v1773 = vadd.f32 %v1136, %v1772
  %v1774 = vpop.f32.mrf.mxu0
  %1775 = vmatprep.mubr.f32.mxu0 %v549
  %1776 = vmatmul.mubr.f32.gmra.mxu0 %v189
  %v1777 = vpop.f32.mrf.mxu0
  %v1778 = vadd.f32 %v1141, %v1777
  %v1779 = vpop.f32.mrf.mxu0
  %1780 = vmatprep.mubr.f32.mxu0 %v552
  %1781 = vmatmul.mubr.f32.gmra.mxu0 %v191
  %v1782 = vpop.f32.mrf.mxu0
  %v1783 = vadd.f32 %v1146, %v1782
  %v1784 = vpop.f32.mrf.mxu0
  %1785 = vmatprep.mubr.f32.mxu0 %v555
  %1786 = vmatmul.mubr.f32.gmra.mxu0 %v193
  %v1787 = vpop.f32.mrf.mxu0
  %v1788 = vadd.f32 %v1151, %v1787
  %v1789 = vpop.f32.mrf.mxu0
  %1790 = vmatprep.mubr.f32.mxu0 %v558
  %1791 = vmatmul.mubr.f32.gmra.mxu0 %v195
  %v1792 = vpop.f32.mrf.mxu0
  %v1793 = vadd.f32 %v1156, %v1792
  %v1794 = vpop.f32.mrf.mxu0
  %1795 = vmatprep.mubr.f32.mxu0 %v561
  %1796 = vmatmul.mubr.f32.gmra.mxu0 %v197
  %v1797 = vpop.f32.mrf.mxu0
  %v1798 = vadd.f32 %v1161, %v1797
  %v1799 = vpop.f32.mrf.mxu0
  %1800 = vmatprep.mubr.f32.mxu0 %v564
  %1801 = vmatmul.mubr.f32.gmra.mxu0 %v199
  %v1802 = vpop.f32.mrf.mxu0
  %v1803 = vadd.f32 %v1166, %v1802
  %v1804 = vpop.f32.mrf.mxu0
  %1805 = vmatprep.mubr.f32.mxu0 %v567
  %1806 = vmatmul.mubr.f32.gmra.mxu0 %v201
  %v1807 = vpop.f32.mrf.mxu0
  %v1808 = vadd.f32 %v1171, %v1807
  %v1809 = vpop.f32.mrf.mxu0
  %1810 = vmatprep.mubr.f32.mxu0 %v570
  %1811 = vmatmul.mubr.f32.gmra.mxu0 %v203
  %v1812 = vpop.f32.mrf.mxu0
  %v1813 = vadd.f32 %v1176, %v1812
  %v1814 = vpop.f32.mrf.mxu0
  %1815 = vmatprep.mubr.f32.mxu0 %v573
  %1816 = vmatmul.mubr.f32.gmra.mxu0 %v205
  %v1817 = vpop.f32.mrf.mxu0
  %v1818 = vadd.f32 %v1181, %v1817
  %v1819 = vpop.f32.mrf.mxu0
  %1820 = vmatprep.mubr.f32.mxu0 %v576
  %1821 = vmatmul.mubr.f32.gmra.mxu0 %v207
  %v1822 = vpop.f32.mrf.mxu0
  %v1823 = vadd.f32 %v1186, %v1822
  %v1824 = vpop.f32.mrf.mxu0
  %1825 = vmatprep.mubr.f32.mxu0 %v579
  %1826 = vmatmul.mubr.f32.gmra.mxu0 %v209
  %v1827 = vpop.f32.mrf.mxu0
  %v1828 = vadd.f32 %v1191, %v1827
  %v1829 = vpop.f32.mrf.mxu0
  %1830 = vmatprep.mubr.f32.mxu0 %v582
  %1831 = vmatmul.mubr.f32.gmra.mxu0 %v211
  %v1832 = vpop.f32.mrf.mxu0
  %v1833 = vadd.f32 %v1196, %v1832
  %v1834 = vpop.f32.mrf.mxu0
  %1835 = vmatprep.mubr.f32.mxu0 %v585
  %1836 = vmatmul.mubr.f32.gmra.mxu0 %v213
  %v1837 = vpop.f32.mrf.mxu0
  %v1838 = vadd.f32 %v1201, %v1837
  %v1839 = vpop.f32.mrf.mxu0
  %1840 = vmatprep.mubr.f32.mxu0 %v588
  %1841 = vmatmul.mubr.f32.gmra.mxu0 %v215
  %v1842 = vpop.f32.mrf.mxu0
  %v1843 = vadd.f32 %v1206, %v1842
  %v1844 = vpop.f32.mrf.mxu0
  %1845 = vmatprep.mubr.f32.mxu0 %v591
  %1846 = vmatmul.mubr.f32.gmra.mxu0 %v217
  %v1847 = vpop.f32.mrf.mxu0
  %v1848 = vadd.f32 %v1211, %v1847
  %v1849 = vpop.f32.mrf.mxu0
  %1850 = vmatprep.mubr.f32.mxu0 %v594
  %1851 = vmatmul.mubr.f32.gmra.mxu0 %v219
  %v1852 = vpop.f32.mrf.mxu0
  %v1853 = vadd.f32 %v1216, %v1852
  %v1854 = vpop.f32.mrf.mxu0
  %1855 = vmatprep.mubr.f32.mxu0 %v597
  %1856 = vmatmul.mubr.f32.gmra.mxu0 %v221
  %v1857 = vpop.f32.mrf.mxu0
  %v1858 = vadd.f32 %v1221, %v1857
  %v1859 = vpop.f32.mrf.mxu0
  %1860 = vmatprep.mubr.f32.mxu0 %v600
  %1861 = vmatmul.mubr.f32.gmra.mxu0 %v223
  %v1862 = vpop.f32.mrf.mxu0
  %v1863 = vadd.f32 %v1226, %v1862
  %v1864 = vpop.f32.mrf.mxu0
  %1865 = vmatprep.mubr.f32.mxu0 %v603
  %1866 = vmatmul.mubr.f32.gmra.mxu0 %v225
  %v1867 = vpop.f32.mrf.mxu0
  %v1868 = vadd.f32 %v1231, %v1867
  %v1869 = vpop.f32.mrf.mxu0
  %1870 = vmatprep.mubr.f32.mxu0 %v606
  %1871 = vmatmul.mubr.f32.gmra.mxu0 %v227
  %v1872 = vpop.f32.mrf.mxu0
  %v1873 = vadd.f32 %v1236, %v1872
  %v1874 = vpop.f32.mrf.mxu0
  %1875 = vmatprep.mubr.f32.mxu0 %v609
  %1876 = vmatmul.mubr.f32.gmra.mxu0 %v229
  %v1877 = vpop.f32.mrf.mxu0
  %v1878 = vadd.f32 %v1241, %v1877
  %v1879 = vpop.f32.mrf.mxu0
  %1880 = vmatprep.mubr.f32.mxu0 %v612
  %1881 = vmatmul.mubr.f32.gmra.mxu0 %v231
  %v1882 = vpop.f32.mrf.mxu0
  %v1883 = vadd.f32 %v1246, %v1882
  %v1884 = vpop.f32.mrf.mxu0
  %1885 = vmatprep.mubr.f32.mxu0 %v615
  %1886 = vmatmul.mubr.f32.gmra.mxu0 %v233
  %v1887 = vpop.f32.mrf.mxu0
  %v1888 = vadd.f32 %v1251, %v1887
  %v1889 = vpop.f32.mrf.mxu0
  %1890 = vdwg.mxu0
  %v1891 = vld [vmem:[%s0 + $0x80] sm:$0xff]
  %v1892 = vld [vmem:[%s0 + $0x88] sm:$0xff]
  %v1893 = vld [vmem:[%s0 + $0x90] sm:$0xff]
  %v1894 = vld [vmem:[%s0 + $0x98] sm:$0xff]
  %v1895 = vld [vmem:[%s0 + $0xa0] sm:$0xff]
  %v1896 = vld [vmem:[%s0 + $0xa8] sm:$0xff]
  %v1897 = vld [vmem:[%s0 + $0xb0] sm:$0xff]
  %v1898 = vld [vmem:[%s0 + $0xb8] sm:$0xff]
  %v1899 = vld [vmem:[%s0 + $0xc0] sm:$0xff]
  %v1900 = vld [vmem:[%s0 + $0xc8] sm:$0xff]
  %v1901 = vld [vmem:[%s0 + $0xd0] sm:$0xff]
  %v1902 = vld [vmem:[%s0 + $0xd8] sm:$0xff]
  %v1903 = vld [vmem:[%s0 + $0xe0] sm:$0xff]
  %v1904 = vld [vmem:[%s0 + $0xe8] sm:$0xff]
  %v1905 = vld [vmem:[%s0 + $0xf0] sm:$0xff]
  %v1906 = vld [vmem:[%s0 + $0xf8] sm:$0xff]
  %v1907 = vld [vmem:[%s0 + $0x100] sm:$0xff]
  %v1908 = vld [vmem:[%s0 + $0x108] sm:$0xff]
  %v1909 = vld [vmem:[%s0 + $0x110] sm:$0xff]
  %v1910 = vld [vmem:[%s0 + $0x118] sm:$0xff]
  %v1911 = vld [vmem:[%s0 + $0x120] sm:$0xff]
  %v1912 = vld [vmem:[%s0 + $0x128] sm:$0xff]
  %v1913 = vld [vmem:[%s0 + $0x130] sm:$0xff]
  %v1914 = vld [vmem:[%s0 + $0x138] sm:$0xff]
  %v1915 = vld [vmem:[%s0 + $0x140] sm:$0xff]
  %v1916 = vld [vmem:[%s0 + $0x148] sm:$0xff]
  %v1917 = vld [vmem:[%s0 + $0x150] sm:$0xff]
  %v1918 = vld [vmem:[%s0 + $0x158] sm:$0xff]
  %v1919 = vld [vmem:[%s0 + $0x160] sm:$0xff]
  %v1920 = vld [vmem:[%s0 + $0x168] sm:$0xff]
  %v1921 = vld [vmem:[%s0 + $0x170] sm:$0xff]
  %v1922 = vld [vmem:[%s0 + $0x178] sm:$0xff]
  %v1923 = vld [vmem:[%s0 + $0x180] sm:$0xff]
  %v1924 = vld [vmem:[%s0 + $0x188] sm:$0xff]
  %v1925 = vld [vmem:[%s0 + $0x190] sm:$0xff]
  %v1926 = vld [vmem:[%s0 + $0x198] sm:$0xff]
  %v1927 = vld [vmem:[%s0 + $0x1a0] sm:$0xff]
  %v1928 = vld [vmem:[%s0 + $0x1a8] sm:$0xff]
  %v1929 = vld [vmem:[%s0 + $0x1b0] sm:$0xff]
  %v1930 = vld [vmem:[%s0 + $0x1b8] sm:$0xff]
  %v1931 = vld [vmem:[%s0 + $0x1c0] sm:$0xff]
  %v1932 = vld [vmem:[%s0 + $0x1c8] sm:$0xff]
  %v1933 = vld [vmem:[%s0 + $0x1d0] sm:$0xff]
  %v1934 = vld [vmem:[%s0 + $0x1d8] sm:$0xff]
  %v1935 = vld [vmem:[%s0 + $0x1e0] sm:$0xff]
  %v1936 = vld [vmem:[%s0 + $0x1e8] sm:$0xff]
  %v1937 = vld [vmem:[%s0 + $0x1f0] sm:$0xff]
  %v1938 = vld [vmem:[%s0 + $0x1f8] sm:$0xff]
  %v1939 = vld [vmem:[%s0 + $0x200] sm:$0xff]
  %v1940 = vld [vmem:[%s0 + $0x208] sm:$0xff]
  %v1941 = vld [vmem:[%s0 + $0x210] sm:$0xff]
  %v1942 = vld [vmem:[%s0 + $0x218] sm:$0xff]
  %v1943 = vld [vmem:[%s0 + $0x220] sm:$0xff]
  %v1944 = vld [vmem:[%s0 + $0x228] sm:$0xff]
  %v1945 = vld [vmem:[%s0 + $0x230] sm:$0xff]
  %v1946 = vld [vmem:[%s0 + $0x238] sm:$0xff]
  %v1947 = vld [vmem:[%s0 + $0x240] sm:$0xff]
  %v1948 = vld [vmem:[%s0 + $0x248] sm:$0xff]
  %v1949 = vld [vmem:[%s0 + $0x250] sm:$0xff]
  %v1950 = vld [vmem:[%s0 + $0x258] sm:$0xff]
  %v1951 = vld [vmem:[%s0 + $0x260] sm:$0xff]
  %v1952 = vld [vmem:[%s0 + $0x268] sm:$0xff]
  %v1953 = vld [vmem:[%s0 + $0x270] sm:$0xff]
  %v1954 = vld [vmem:[%s0 + $0x278] sm:$0xff]
  %v1955 = vld [vmem:[%s0 + $0x280] sm:$0xff]
  %v1956 = vld [vmem:[%s0 + $0x288] sm:$0xff]
  %v1957 = vld [vmem:[%s0 + $0x290] sm:$0xff]
  %v1958 = vld [vmem:[%s0 + $0x298] sm:$0xff]
  %v1959 = vld [vmem:[%s0 + $0x2a0] sm:$0xff]
  %v1960 = vld [vmem:[%s0 + $0x2a8] sm:$0xff]
  %v1961 = vld [vmem:[%s0 + $0x2b0] sm:$0xff]
  %v1962 = vld [vmem:[%s0 + $0x2b8] sm:$0xff]
  %v1963 = vld [vmem:[%s0 + $0x2c0] sm:$0xff]
  %v1964 = vld [vmem:[%s0 + $0x2c8] sm:$0xff]
  %v1965 = vld [vmem:[%s0 + $0x2d0] sm:$0xff]
  %v1966 = vld [vmem:[%s0 + $0x2d8] sm:$0xff]
  %v1967 = vld [vmem:[%s0 + $0x2e0] sm:$0xff]
  %v1968 = vld [vmem:[%s0 + $0x2e8] sm:$0xff]
  %v1969 = vld [vmem:[%s0 + $0x2f0] sm:$0xff]
  %v1970 = vld [vmem:[%s0 + $0x2f8] sm:$0xff]
  %v1971 = vld [vmem:[%s0 + $0x300] sm:$0xff]
  %v1972 = vld [vmem:[%s0 + $0x308] sm:$0xff]
  %v1973 = vld [vmem:[%s0 + $0x310] sm:$0xff]
  %v1974 = vld [vmem:[%s0 + $0x318] sm:$0xff]
  %v1975 = vld [vmem:[%s0 + $0x320] sm:$0xff]
  %v1976 = vld [vmem:[%s0 + $0x328] sm:$0xff]
  %v1977 = vld [vmem:[%s0 + $0x330] sm:$0xff]
  %v1978 = vld [vmem:[%s0 + $0x338] sm:$0xff]
  %v1979 = vld [vmem:[%s0 + $0x340] sm:$0xff]
  %v1980 = vld [vmem:[%s0 + $0x348] sm:$0xff]
  %v1981 = vld [vmem:[%s0 + $0x350] sm:$0xff]
  %v1982 = vld [vmem:[%s0 + $0x358] sm:$0xff]
  %v1983 = vld [vmem:[%s0 + $0x360] sm:$0xff]
  %v1984 = vld [vmem:[%s0 + $0x368] sm:$0xff]
  %v1985 = vld [vmem:[%s0 + $0x370] sm:$0xff]
  %v1986 = vld [vmem:[%s0 + $0x378] sm:$0xff]
  %v1987 = vld [vmem:[%s0 + $0x380] sm:$0xff]
  %v1988 = vld [vmem:[%s0 + $0x388] sm:$0xff]
  %v1989 = vld [vmem:[%s0 + $0x390] sm:$0xff]
  %v1990 = vld [vmem:[%s0 + $0x398] sm:$0xff]
  %v1991 = vld [vmem:[%s0 + $0x3a0] sm:$0xff]
  %v1992 = vld [vmem:[%s0 + $0x3a8] sm:$0xff]
  %v1993 = vld [vmem:[%s0 + $0x3b0] sm:$0xff]
  %v1994 = vld [vmem:[%s0 + $0x3b8] sm:$0xff]
  %v1995 = vld [vmem:[%s0 + $0x3c0] sm:$0xff]
  %v1996 = vld [vmem:[%s0 + $0x3c8] sm:$0xff]
  %v1997 = vld [vmem:[%s0 + $0x3d0] sm:$0xff]
  %v1998 = vld [vmem:[%s0 + $0x3d8] sm:$0xff]
  %v1999 = vld [vmem:[%s0 + $0x3e0] sm:$0xff]
  %v2000 = vld [vmem:[%s0 + $0x3e8] sm:$0xff]
  %v2001 = vld [vmem:[%s0 + $0x3f0] sm:$0xff]
  %v2002 = vld [vmem:[%s0 + $0x3f8] sm:$0xff]
  %v2003 = vld [vmem:[%s0 + $0x400] sm:$0xff]
  %v2004 = vld [vmem:[%s0 + $0x408] sm:$0xff]
  %v2005 = vld [vmem:[%s0 + $0x410] sm:$0xff]
  %v2006 = vld [vmem:[%s0 + $0x418] sm:$0xff]
  %v2007 = vld [vmem:[%s0 + $0x420] sm:$0xff]
  %v2008 = vld [vmem:[%s0 + $0x428] sm:$0xff]
  %v2009 = vld [vmem:[%s0 + $0x430] sm:$0xff]
  %v2010 = vld [vmem:[%s0 + $0x438] sm:$0xff]
  %v2011 = vld [vmem:[%s0 + $0x440] sm:$0xff]
  %v2012 = vld [vmem:[%s0 + $0x448] sm:$0xff]
  %v2013 = vld [vmem:[%s0 + $0x450] sm:$0xff]
  %v2014 = vld [vmem:[%s0 + $0x458] sm:$0xff]
  %v2015 = vld [vmem:[%s0 + $0x460] sm:$0xff]
  %v2016 = vld [vmem:[%s0 + $0x468] sm:$0xff]
  %v2017 = vld [vmem:[%s0 + $0x470] sm:$0xff]
  %v2018 = vld [vmem:[%s0 + $0x478] sm:$0xff]
  %v2019 = vld [vmem:[%s0 + $0x480] sm:$0xff]
  %v2020 = vld [vmem:[%s0 + $0x488] sm:$0xff]
  %v2021 = vld [vmem:[%s0 + $0x490] sm:$0xff]
  %v2022 = vld [vmem:[%s0 + $0x498] sm:$0xff]
  %v2023 = vld [vmem:[%s0 + $0x4a0] sm:$0xff]
  %v2024 = vld [vmem:[%s0 + $0x4a8] sm:$0xff]
  %v2025 = vld [vmem:[%s0 + $0x4b0] sm:$0xff]
  %v2026 = vld [vmem:[%s0 + $0x4b8] sm:$0xff]
  %v2027 = vld [vmem:[%s0 + $0x4c0] sm:$0xff]
  %v2028 = vld [vmem:[%s0 + $0x4c8] sm:$0xff]
  %v2029 = vld [vmem:[%s0 + $0x4d0] sm:$0xff]
  %v2030 = vld [vmem:[%s0 + $0x4d8] sm:$0xff]
  %v2031 = vld [vmem:[%s0 + $0x4e0] sm:$0xff]
  %v2032 = vld [vmem:[%s0 + $0x4e8] sm:$0xff]
  %v2033 = vld [vmem:[%s0 + $0x4f0] sm:$0xff]
  %v2034 = vld [vmem:[%s0 + $0x4f8] sm:$0xff]
  %v2035 = vld [vmem:[%s0 + $0x500] sm:$0xff]
  %v2036 = vld [vmem:[%s0 + $0x508] sm:$0xff]
  %v2037 = vld [vmem:[%s0 + $0x510] sm:$0xff]
  %v2038 = vld [vmem:[%s0 + $0x518] sm:$0xff]
  %v2039 = vld [vmem:[%s0 + $0x520] sm:$0xff]
  %v2040 = vld [vmem:[%s0 + $0x528] sm:$0xff]
  %v2041 = vld [vmem:[%s0 + $0x530] sm:$0xff]
  %v2042 = vld [vmem:[%s0 + $0x538] sm:$0xff]
  %v2043 = vld [vmem:[%s0 + $0x540] sm:$0xff]
  %v2044 = vld [vmem:[%s0 + $0x548] sm:$0xff]
  %v2045 = vld [vmem:[%s0 + $0x550] sm:$0xff]
  %v2046 = vld [vmem:[%s0 + $0x558] sm:$0xff]
  %v2047 = vld [vmem:[%s0 + $0x560] sm:$0xff]
  %v2048 = vld [vmem:[%s0 + $0x568] sm:$0xff]
  %v2049 = vld [vmem:[%s0 + $0x570] sm:$0xff]
  %v2050 = vld [vmem:[%s0 + $0x578] sm:$0xff]
  %v2051 = vld [vmem:[%s0 + $0x580] sm:$0xff]
  %v2052 = vld [vmem:[%s0 + $0x588] sm:$0xff]
  %v2053 = vld [vmem:[%s0 + $0x590] sm:$0xff]
  %v2054 = vld [vmem:[%s0 + $0x598] sm:$0xff]
  %v2055 = vld [vmem:[%s0 + $0x5a0] sm:$0xff]
  %v2056 = vld [vmem:[%s0 + $0x5a8] sm:$0xff]
  %v2057 = vld [vmem:[%s0 + $0x5b0] sm:$0xff]
  %v2058 = vld [vmem:[%s0 + $0x5b8] sm:$0xff]
  %v2059 = vld [vmem:[%s0 + $0x5c0] sm:$0xff]
  %v2060 = vld [vmem:[%s0 + $0x5c8] sm:$0xff]
  %v2061 = vld [vmem:[%s0 + $0x5d0] sm:$0xff]
  %v2062 = vld [vmem:[%s0 + $0x5d8] sm:$0xff]
  %v2063 = vld [vmem:[%s0 + $0x5e0] sm:$0xff]
  %v2064 = vld [vmem:[%s0 + $0x5e8] sm:$0xff]
  %v2065 = vld [vmem:[%s0 + $0x5f0] sm:$0xff]
  %v2066 = vld [vmem:[%s0 + $0x5f8] sm:$0xff]
  %v2067 = vld [vmem:[%s0 + $0x600] sm:$0xff]
  %v2068 = vld [vmem:[%s0 + $0x608] sm:$0xff]
  %v2069 = vld [vmem:[%s0 + $0x610] sm:$0xff]
  %v2070 = vld [vmem:[%s0 + $0x618] sm:$0xff]
  %v2071 = vld [vmem:[%s0 + $0x620] sm:$0xff]
  %v2072 = vld [vmem:[%s0 + $0x628] sm:$0xff]
  %v2073 = vld [vmem:[%s0 + $0x630] sm:$0xff]
  %v2074 = vld [vmem:[%s0 + $0x638] sm:$0xff]
  %v2075 = vld [vmem:[%s0 + $0x640] sm:$0xff]
  %v2076 = vld [vmem:[%s0 + $0x648] sm:$0xff]
  %v2077 = vld [vmem:[%s0 + $0x650] sm:$0xff]
  %v2078 = vld [vmem:[%s0 + $0x658] sm:$0xff]
  %v2079 = vld [vmem:[%s0 + $0x660] sm:$0xff]
  %v2080 = vld [vmem:[%s0 + $0x668] sm:$0xff]
  %v2081 = vld [vmem:[%s0 + $0x670] sm:$0xff]
  %v2082 = vld [vmem:[%s0 + $0x678] sm:$0xff]
  %v2083 = vld [vmem:[%s0 + $0x680] sm:$0xff]
  %v2084 = vld [vmem:[%s0 + $0x688] sm:$0xff]
  %v2085 = vld [vmem:[%s0 + $0x690] sm:$0xff]
  %v2086 = vld [vmem:[%s0 + $0x698] sm:$0xff]
  %v2087 = vld [vmem:[%s0 + $0x6a0] sm:$0xff]
  %v2088 = vld [vmem:[%s0 + $0x6a8] sm:$0xff]
  %v2089 = vld [vmem:[%s0 + $0x6b0] sm:$0xff]
  %v2090 = vld [vmem:[%s0 + $0x6b8] sm:$0xff]
  %v2091 = vld [vmem:[%s0 + $0x6c0] sm:$0xff]
  %v2092 = vld [vmem:[%s0 + $0x6c8] sm:$0xff]
  %v2093 = vld [vmem:[%s0 + $0x6d0] sm:$0xff]
  %v2094 = vld [vmem:[%s0 + $0x6d8] sm:$0xff]
  %v2095 = vld [vmem:[%s0 + $0x6e0] sm:$0xff]
  %v2096 = vld [vmem:[%s0 + $0x6e8] sm:$0xff]
  %v2097 = vld [vmem:[%s0 + $0x6f0] sm:$0xff]
  %v2098 = vld [vmem:[%s0 + $0x6f8] sm:$0xff]
  %v2099 = vld [vmem:[%s0 + $0x700] sm:$0xff]
  %v2100 = vld [vmem:[%s0 + $0x708] sm:$0xff]
  %v2101 = vld [vmem:[%s0 + $0x710] sm:$0xff]
  %v2102 = vld [vmem:[%s0 + $0x718] sm:$0xff]
  %v2103 = vld [vmem:[%s0 + $0x720] sm:$0xff]
  %v2104 = vld [vmem:[%s0 + $0x728] sm:$0xff]
  %v2105 = vld [vmem:[%s0 + $0x730] sm:$0xff]
  %v2106 = vld [vmem:[%s0 + $0x738] sm:$0xff]
  %v2107 = vld [vmem:[%s0 + $0x740] sm:$0xff]
  %v2108 = vld [vmem:[%s0 + $0x748] sm:$0xff]
  %v2109 = vld [vmem:[%s0 + $0x750] sm:$0xff]
  %v2110 = vld [vmem:[%s0 + $0x758] sm:$0xff]
  %v2111 = vld [vmem:[%s0 + $0x760] sm:$0xff]
  %v2112 = vld [vmem:[%s0 + $0x768] sm:$0xff]
  %v2113 = vld [vmem:[%s0 + $0x770] sm:$0xff]
  %v2114 = vld [vmem:[%s0 + $0x778] sm:$0xff]
  %s2115 = scalar_lea.vmem %s1, 384
  %v2116 = vld [vmem:[%s2115] sm:$0xff]
  %v2117 = vld [vmem:[%s2115 + $0x8] sm:$0xff]
  %v2118 = vld [vmem:[%s2115 + $0x10] sm:$0xff]
  %v2119 = vld [vmem:[%s2115 + $0x18] sm:$0xff]
  %v2120 = vld [vmem:[%s2115 + $0x20] sm:$0xff]
  %v2121 = vld [vmem:[%s2115 + $0x28] sm:$0xff]
  %v2122 = vld [vmem:[%s2115 + $0x30] sm:$0xff]
  %v2123 = vld [vmem:[%s2115 + $0x38] sm:$0xff]
  %v2124 = vld [vmem:[%s2115 + $0x40] sm:$0xff]
  %v2125 = vld [vmem:[%s2115 + $0x48] sm:$0xff]
  %v2126 = vld [vmem:[%s2115 + $0x50] sm:$0xff]
  %v2127 = vld [vmem:[%s2115 + $0x58] sm:$0xff]
  %v2128 = vld [vmem:[%s2115 + $0x60] sm:$0xff]
  %v2129 = vld [vmem:[%s2115 + $0x68] sm:$0xff]
  %v2130 = vld [vmem:[%s2115 + $0x70] sm:$0xff]
  %v2131 = vld [vmem:[%s2115 + $0x78] sm:$0xff]
  %v2132 = vld [vmem:[%s2115 + $0x80] sm:$0xff]
  %v2133 = vld [vmem:[%s2115 + $0x88] sm:$0xff]
  %v2134 = vld [vmem:[%s2115 + $0x90] sm:$0xff]
  %v2135 = vld [vmem:[%s2115 + $0x98] sm:$0xff]
  %v2136 = vld [vmem:[%s2115 + $0xa0] sm:$0xff]
  %v2137 = vld [vmem:[%s2115 + $0xa8] sm:$0xff]
  %v2138 = vld [vmem:[%s2115 + $0xb0] sm:$0xff]
  %v2139 = vld [vmem:[%s2115 + $0xb8] sm:$0xff]
  %v2141 = vsel %vm292, %v1892, 0
  %v2144 = vsel %vm292, %v1894, 0
  %v2147 = vsel %vm292, %v1896, 0
  %v2150 = vsel %vm292, %v1898, 0
  %v2153 = vsel %vm292, %v1900, 0
  %v2156 = vsel %vm292, %v1902, 0
  %v2159 = vsel %vm292, %v1904, 0
  %v2162 = vsel %vm292, %v1906, 0
  %v2165 = vsel %vm292, %v1908, 0
  %v2168 = vsel %vm292, %v1910, 0
  %v2171 = vsel %vm292, %v1912, 0
  %v2174 = vsel %vm292, %v1914, 0
  %v2177 = vsel %vm292, %v1916, 0
  %v2180 = vsel %vm292, %v1918, 0
  %v2183 = vsel %vm292, %v1920, 0
  %v2186 = vsel %vm292, %v1922, 0
  %v2189 = vsel %vm292, %v1924, 0
  %v2192 = vsel %vm292, %v1926, 0
  %v2195 = vsel %vm292, %v1928, 0
  %v2198 = vsel %vm292, %v1930, 0
  %v2201 = vsel %vm292, %v1932, 0
  %v2204 = vsel %vm292, %v1934, 0
  %v2207 = vsel %vm292, %v1936, 0
  %v2210 = vsel %vm292, %v1938, 0
  %v2213 = vsel %vm292, %v1940, 0
  %v2216 = vsel %vm292, %v1942, 0
  %v2219 = vsel %vm292, %v1944, 0
  %v2222 = vsel %vm292, %v1946, 0
  %v2225 = vsel %vm292, %v1948, 0
  %v2228 = vsel %vm292, %v1950, 0
  %v2231 = vsel %vm292, %v1952, 0
  %v2234 = vsel %vm292, %v1954, 0
  %v2237 = vsel %vm292, %v1956, 0
  %v2240 = vsel %vm292, %v1958, 0
  %v2243 = vsel %vm292, %v1960, 0
  %v2246 = vsel %vm292, %v1962, 0
  %v2249 = vsel %vm292, %v1964, 0
  %v2252 = vsel %vm292, %v1966, 0
  %v2255 = vsel %vm292, %v1968, 0
  %v2258 = vsel %vm292, %v1970, 0
  %v2261 = vsel %vm292, %v1972, 0
  %v2264 = vsel %vm292, %v1974, 0
  %v2267 = vsel %vm292, %v1976, 0
  %v2270 = vsel %vm292, %v1978, 0
  %v2273 = vsel %vm292, %v1980, 0
  %v2276 = vsel %vm292, %v1982, 0
  %v2279 = vsel %vm292, %v1984, 0
  %v2282 = vsel %vm292, %v1986, 0
  %v2285 = vsel %vm292, %v1988, 0
  %v2288 = vsel %vm292, %v1990, 0
  %v2291 = vsel %vm292, %v1992, 0
  %v2294 = vsel %vm292, %v1994, 0
  %v2297 = vsel %vm292, %v1996, 0
  %v2300 = vsel %vm292, %v1998, 0
  %v2303 = vsel %vm292, %v2000, 0
  %v2306 = vsel %vm292, %v2002, 0
  %v2309 = vsel %vm292, %v2004, 0
  %v2312 = vsel %vm292, %v2006, 0
  %v2315 = vsel %vm292, %v2008, 0
  %v2318 = vsel %vm292, %v2010, 0
  %v2321 = vsel %vm292, %v2012, 0
  %v2324 = vsel %vm292, %v2014, 0
  %v2327 = vsel %vm292, %v2016, 0
  %v2330 = vsel %vm292, %v2018, 0
  %v2333 = vsel %vm292, %v2020, 0
  %v2336 = vsel %vm292, %v2022, 0
  %v2339 = vsel %vm292, %v2024, 0
  %v2342 = vsel %vm292, %v2026, 0
  %v2345 = vsel %vm292, %v2028, 0
  %v2348 = vsel %vm292, %v2030, 0
  %v2351 = vsel %vm292, %v2032, 0
  %v2354 = vsel %vm292, %v2034, 0
  %v2357 = vsel %vm292, %v2036, 0
  %v2360 = vsel %vm292, %v2038, 0
  %v2363 = vsel %vm292, %v2040, 0
  %v2366 = vsel %vm292, %v2042, 0
  %v2369 = vsel %vm292, %v2044, 0
  %v2372 = vsel %vm292, %v2046, 0
  %v2375 = vsel %vm292, %v2048, 0
  %v2378 = vsel %vm292, %v2050, 0
  %v2381 = vsel %vm292, %v2052, 0
  %v2384 = vsel %vm292, %v2054, 0
  %v2387 = vsel %vm292, %v2056, 0
  %v2390 = vsel %vm292, %v2058, 0
  %v2393 = vsel %vm292, %v2060, 0
  %v2396 = vsel %vm292, %v2062, 0
  %v2399 = vsel %vm292, %v2064, 0
  %v2402 = vsel %vm292, %v2066, 0
  %v2405 = vsel %vm292, %v2068, 0
  %v2408 = vsel %vm292, %v2070, 0
  %v2411 = vsel %vm292, %v2072, 0
  %v2414 = vsel %vm292, %v2074, 0
  %v2417 = vsel %vm292, %v2076, 0
  %v2420 = vsel %vm292, %v2078, 0
  %v2423 = vsel %vm292, %v2080, 0
  %v2426 = vsel %vm292, %v2082, 0
  %v2429 = vsel %vm292, %v2084, 0
  %v2432 = vsel %vm292, %v2086, 0
  %v2435 = vsel %vm292, %v2088, 0
  %v2438 = vsel %vm292, %v2090, 0
  %v2441 = vsel %vm292, %v2092, 0
  %v2444 = vsel %vm292, %v2094, 0
  %v2447 = vsel %vm292, %v2096, 0
  %v2450 = vsel %vm292, %v2098, 0
  %v2453 = vsel %vm292, %v2100, 0
  %v2456 = vsel %vm292, %v2102, 0
  %v2459 = vsel %vm292, %v2104, 0
  %v2462 = vsel %vm292, %v2106, 0
  %v2465 = vsel %vm292, %v2108, 0
  %v2468 = vsel %vm292, %v2110, 0
  %v2471 = vsel %vm292, %v2112, 0
  %v2474 = vsel %vm292, %v2114, 0
  %2476 = vmatprep.subr.mxu0 0.0
  %2477 = vmatpush1.msra.mxu0 %v2131
  %2478 = vmatprep.subr.mxu0 0.0
  %2479 = vmatpush1.msra.mxu0 %v2130
  %2480 = vmatprep.subr.mxu0 0.0
  %2481 = vmatpush1.msra.mxu0 %v2129
  %2482 = vmatprep.subr.mxu0 0.0
  %2483 = vmatpush1.msra.mxu0 %v2128
  %2484 = vmatprep.subr.mxu0 0.0
  %2485 = vmatpush1.msra.mxu0 %v2127
  %2486 = vmatprep.subr.mxu0 0.0
  %2487 = vmatpush1.msra.mxu0 %v2126
  %2488 = vmatprep.subr.mxu0 0.0
  %2489 = vmatpush1.msra.mxu0 %v2125
  %2490 = vmatprep.subr.mxu0 0.0
  %2491 = vmatpush1.msra.mxu0 %v2124
  %2492 = vmatprep.subr.mxu0 0.0
  %2493 = vmatpush1.msra.mxu0 %v2123
  %2494 = vmatprep.subr.mxu0 0.0
  %2495 = vmatpush1.msra.mxu0 %v2122
  %2496 = vmatprep.subr.mxu0 0.0
  %2497 = vmatpush1.msra.mxu0 %v2121
  %2498 = vmatprep.subr.mxu0 0.0
  %2499 = vmatpush1.msra.mxu0 %v2120
  %2500 = vmatprep.subr.mxu0 0.0
  %2501 = vmatpush1.msra.mxu0 %v2119
  %2502 = vmatprep.subr.mxu0 0.0
  %2503 = vmatpush1.msra.mxu0 %v2118
  %2504 = vmatprep.subr.mxu0 0.0
  %2505 = vmatpush1.msra.mxu0 %v2117
  %2506 = vmatprep.subr.mxu0 0.0
  %2507 = vmatpush1.msra.mxu0 %v2116
  %2508 = vmatprep.subr.mxu0 0.0
  %2509 = vmatpush2.msra.mxu0 0.0
  %2510 = vmatprep.subr.mxu0 0.0
  %2511 = vmatpush2.msra.mxu0 0.0
  %2512 = vmatprep.subr.mxu0 0.0
  %2513 = vmatpush2.msra.mxu0 0.0
  %2514 = vmatprep.subr.mxu0 0.0
  %2515 = vmatpush2.msra.mxu0 0.0
  %2516 = vmatprep.subr.mxu0 0.0
  %2517 = vmatpush2.msra.mxu0 0.0
  %2518 = vmatprep.subr.mxu0 0.0
  %2519 = vmatpush2.msra.mxu0 0.0
  %2520 = vmatprep.subr.mxu0 0.0
  %2521 = vmatpush2.msra.mxu0 0.0
  %2522 = vmatprep.subr.mxu0 0.0
  %2523 = vmatpush2.msra.mxu0 0.0
  %2524 = vmatprep.subr.mxu0 0.0
  %2525 = vmatpush2.msra.mxu0 %v2139
  %2526 = vmatprep.subr.mxu0 0.0
  %2527 = vmatpush2.msra.mxu0 %v2138
  %2528 = vmatprep.subr.mxu0 0.0
  %2529 = vmatpush2.msra.mxu0 %v2137
  %2530 = vmatprep.subr.mxu0 0.0
  %2531 = vmatpush2.msra.mxu0 %v2136
  %2532 = vmatprep.subr.mxu0 0.0
  %2533 = vmatpush2.msra.mxu0 %v2135
  %2534 = vmatprep.subr.mxu0 0.0
  %2535 = vmatpush2.msra.mxu0 %v2134
  %2536 = vmatprep.subr.mxu0 0.0
  %2537 = vmatpush2.msra.mxu0 %v2133
  %2538 = vmatprep.subr.mxu0 0.0
  %2539 = vmatpush2.msra.mxu0 %v2132
  %2540 = vmatprep.mubr.f32.mxu0 %v2141
  %2541 = vmatmul.mubr.f32.gmra.mxu0 %v1891
  %v2542 = vpop.f32.mrf.mxu0
  %v2543 = vadd.f32 0.0, %v2542
  %v2544 = vpop.f32.mrf.mxu0
  %2545 = vmatprep.mubr.f32.mxu0 %v2144
  %2546 = vmatmul.mubr.f32.gmra.mxu0 %v1893
  %v2547 = vpop.f32.mrf.mxu0
  %v2548 = vadd.f32 0.0, %v2547
  %v2549 = vpop.f32.mrf.mxu0
  %2550 = vmatprep.mubr.f32.mxu0 %v2147
  %2551 = vmatmul.mubr.f32.gmra.mxu0 %v1895
  %v2552 = vpop.f32.mrf.mxu0
  %v2553 = vadd.f32 0.0, %v2552
  %v2554 = vpop.f32.mrf.mxu0
  %2555 = vmatprep.mubr.f32.mxu0 %v2150
  %2556 = vmatmul.mubr.f32.gmra.mxu0 %v1897
  %v2557 = vpop.f32.mrf.mxu0
  %v2558 = vadd.f32 0.0, %v2557
  %v2559 = vpop.f32.mrf.mxu0
  %2560 = vmatprep.mubr.f32.mxu0 %v2153
  %2561 = vmatmul.mubr.f32.gmra.mxu0 %v1899
  %v2562 = vpop.f32.mrf.mxu0
  %v2563 = vadd.f32 0.0, %v2562
  %v2564 = vpop.f32.mrf.mxu0
  %2565 = vmatprep.mubr.f32.mxu0 %v2156
  %2566 = vmatmul.mubr.f32.gmra.mxu0 %v1901
  %v2567 = vpop.f32.mrf.mxu0
  %v2568 = vadd.f32 0.0, %v2567
  %v2569 = vpop.f32.mrf.mxu0
  %2570 = vmatprep.mubr.f32.mxu0 %v2159
  %2571 = vmatmul.mubr.f32.gmra.mxu0 %v1903
  %v2572 = vpop.f32.mrf.mxu0
  %v2573 = vadd.f32 0.0, %v2572
  %v2574 = vpop.f32.mrf.mxu0
  %2575 = vmatprep.mubr.f32.mxu0 %v2162
  %2576 = vmatmul.mubr.f32.gmra.mxu0 %v1905
  %v2577 = vpop.f32.mrf.mxu0
  %v2578 = vadd.f32 0.0, %v2577
  %v2579 = vpop.f32.mrf.mxu0
  %2580 = vmatprep.mubr.f32.mxu0 %v2165
  %2581 = vmatmul.mubr.f32.gmra.mxu0 %v1907
  %v2582 = vpop.f32.mrf.mxu0
  %v2583 = vadd.f32 0.0, %v2582
  %v2584 = vpop.f32.mrf.mxu0
  %2585 = vmatprep.mubr.f32.mxu0 %v2168
  %2586 = vmatmul.mubr.f32.gmra.mxu0 %v1909
  %v2587 = vpop.f32.mrf.mxu0
  %v2588 = vadd.f32 0.0, %v2587
  %v2589 = vpop.f32.mrf.mxu0
  %2590 = vmatprep.mubr.f32.mxu0 %v2171
  %2591 = vmatmul.mubr.f32.gmra.mxu0 %v1911
  %v2592 = vpop.f32.mrf.mxu0
  %v2593 = vadd.f32 0.0, %v2592
  %v2594 = vpop.f32.mrf.mxu0
  %2595 = vmatprep.mubr.f32.mxu0 %v2174
  %2596 = vmatmul.mubr.f32.gmra.mxu0 %v1913
  %v2597 = vpop.f32.mrf.mxu0
  %v2598 = vadd.f32 0.0, %v2597
  %v2599 = vpop.f32.mrf.mxu0
  %2600 = vmatprep.mubr.f32.mxu0 %v2177
  %2601 = vmatmul.mubr.f32.gmra.mxu0 %v1915
  %v2602 = vpop.f32.mrf.mxu0
  %v2603 = vadd.f32 0.0, %v2602
  %v2604 = vpop.f32.mrf.mxu0
  %2605 = vmatprep.mubr.f32.mxu0 %v2180
  %2606 = vmatmul.mubr.f32.gmra.mxu0 %v1917
  %v2607 = vpop.f32.mrf.mxu0
  %v2608 = vadd.f32 0.0, %v2607
  %v2609 = vpop.f32.mrf.mxu0
  %2610 = vmatprep.mubr.f32.mxu0 %v2183
  %2611 = vmatmul.mubr.f32.gmra.mxu0 %v1919
  %v2612 = vpop.f32.mrf.mxu0
  %v2613 = vadd.f32 0.0, %v2612
  %v2614 = vpop.f32.mrf.mxu0
  %2615 = vmatprep.mubr.f32.mxu0 %v2186
  %2616 = vmatmul.mubr.f32.gmra.mxu0 %v1921
  %v2617 = vpop.f32.mrf.mxu0
  %v2618 = vadd.f32 0.0, %v2617
  %v2619 = vpop.f32.mrf.mxu0
  %2620 = vmatprep.mubr.f32.mxu0 %v2189
  %2621 = vmatmul.mubr.f32.gmra.mxu0 %v1923
  %v2622 = vpop.f32.mrf.mxu0
  %v2623 = vadd.f32 0.0, %v2622
  %v2624 = vpop.f32.mrf.mxu0
  %2625 = vmatprep.mubr.f32.mxu0 %v2192
  %2626 = vmatmul.mubr.f32.gmra.mxu0 %v1925
  %v2627 = vpop.f32.mrf.mxu0
  %v2628 = vadd.f32 0.0, %v2627
  %v2629 = vpop.f32.mrf.mxu0
  %2630 = vmatprep.mubr.f32.mxu0 %v2195
  %2631 = vmatmul.mubr.f32.gmra.mxu0 %v1927
  %v2632 = vpop.f32.mrf.mxu0
  %v2633 = vadd.f32 0.0, %v2632
  %v2634 = vpop.f32.mrf.mxu0
  %2635 = vmatprep.mubr.f32.mxu0 %v2198
  %2636 = vmatmul.mubr.f32.gmra.mxu0 %v1929
  %v2637 = vpop.f32.mrf.mxu0
  %v2638 = vadd.f32 0.0, %v2637
  %v2639 = vpop.f32.mrf.mxu0
  %2640 = vmatprep.mubr.f32.mxu0 %v2201
  %2641 = vmatmul.mubr.f32.gmra.mxu0 %v1931
  %v2642 = vpop.f32.mrf.mxu0
  %v2643 = vadd.f32 0.0, %v2642
  %v2644 = vpop.f32.mrf.mxu0
  %2645 = vmatprep.mubr.f32.mxu0 %v2204
  %2646 = vmatmul.mubr.f32.gmra.mxu0 %v1933
  %v2647 = vpop.f32.mrf.mxu0
  %v2648 = vadd.f32 0.0, %v2647
  %v2649 = vpop.f32.mrf.mxu0
  %2650 = vmatprep.mubr.f32.mxu0 %v2207
  %2651 = vmatmul.mubr.f32.gmra.mxu0 %v1935
  %v2652 = vpop.f32.mrf.mxu0
  %v2653 = vadd.f32 0.0, %v2652
  %v2654 = vpop.f32.mrf.mxu0
  %2655 = vmatprep.mubr.f32.mxu0 %v2210
  %2656 = vmatmul.mubr.f32.gmra.mxu0 %v1937
  %v2657 = vpop.f32.mrf.mxu0
  %v2658 = vadd.f32 0.0, %v2657
  %v2659 = vpop.f32.mrf.mxu0
  %2660 = vmatprep.mubr.f32.mxu0 %v2213
  %2661 = vmatmul.mubr.f32.gmra.mxu0 %v1939
  %v2662 = vpop.f32.mrf.mxu0
  %v2663 = vadd.f32 0.0, %v2662
  %v2664 = vpop.f32.mrf.mxu0
  %2665 = vmatprep.mubr.f32.mxu0 %v2216
  %2666 = vmatmul.mubr.f32.gmra.mxu0 %v1941
  %v2667 = vpop.f32.mrf.mxu0
  %v2668 = vadd.f32 0.0, %v2667
  %v2669 = vpop.f32.mrf.mxu0
  %2670 = vmatprep.mubr.f32.mxu0 %v2219
  %2671 = vmatmul.mubr.f32.gmra.mxu0 %v1943
  %v2672 = vpop.f32.mrf.mxu0
  %v2673 = vadd.f32 0.0, %v2672
  %v2674 = vpop.f32.mrf.mxu0
  %2675 = vmatprep.mubr.f32.mxu0 %v2222
  %2676 = vmatmul.mubr.f32.gmra.mxu0 %v1945
  %v2677 = vpop.f32.mrf.mxu0
  %v2678 = vadd.f32 0.0, %v2677
  %v2679 = vpop.f32.mrf.mxu0
  %2680 = vmatprep.mubr.f32.mxu0 %v2225
  %2681 = vmatmul.mubr.f32.gmra.mxu0 %v1947
  %v2682 = vpop.f32.mrf.mxu0
  %v2683 = vadd.f32 0.0, %v2682
  %v2684 = vpop.f32.mrf.mxu0
  %2685 = vmatprep.mubr.f32.mxu0 %v2228
  %2686 = vmatmul.mubr.f32.gmra.mxu0 %v1949
  %v2687 = vpop.f32.mrf.mxu0
  %v2688 = vadd.f32 0.0, %v2687
  %v2689 = vpop.f32.mrf.mxu0
  %2690 = vmatprep.mubr.f32.mxu0 %v2231
  %2691 = vmatmul.mubr.f32.gmra.mxu0 %v1951
  %v2692 = vpop.f32.mrf.mxu0
  %v2693 = vadd.f32 0.0, %v2692
  %v2694 = vpop.f32.mrf.mxu0
  %2695 = vmatprep.mubr.f32.mxu0 %v2234
  %2696 = vmatmul.mubr.f32.gmra.mxu0 %v1953
  %v2697 = vpop.f32.mrf.mxu0
  %v2698 = vadd.f32 0.0, %v2697
  %v2699 = vpop.f32.mrf.mxu0
  %2700 = vmatprep.mubr.f32.mxu0 %v2237
  %2701 = vmatmul.mubr.f32.gmra.mxu0 %v1955
  %v2702 = vpop.f32.mrf.mxu0
  %v2703 = vadd.f32 0.0, %v2702
  %v2704 = vpop.f32.mrf.mxu0
  %2705 = vmatprep.mubr.f32.mxu0 %v2240
  %2706 = vmatmul.mubr.f32.gmra.mxu0 %v1957
  %v2707 = vpop.f32.mrf.mxu0
  %v2708 = vadd.f32 0.0, %v2707
  %v2709 = vpop.f32.mrf.mxu0
  %2710 = vmatprep.mubr.f32.mxu0 %v2243
  %2711 = vmatmul.mubr.f32.gmra.mxu0 %v1959
  %v2712 = vpop.f32.mrf.mxu0
  %v2713 = vadd.f32 0.0, %v2712
  %v2714 = vpop.f32.mrf.mxu0
  %2715 = vmatprep.mubr.f32.mxu0 %v2246
  %2716 = vmatmul.mubr.f32.gmra.mxu0 %v1961
  %v2717 = vpop.f32.mrf.mxu0
  %v2718 = vadd.f32 0.0, %v2717
  %v2719 = vpop.f32.mrf.mxu0
  %2720 = vmatprep.mubr.f32.mxu0 %v2249
  %2721 = vmatmul.mubr.f32.gmra.mxu0 %v1963
  %v2722 = vpop.f32.mrf.mxu0
  %v2723 = vadd.f32 0.0, %v2722
  %v2724 = vpop.f32.mrf.mxu0
  %2725 = vmatprep.mubr.f32.mxu0 %v2252
  %2726 = vmatmul.mubr.f32.gmra.mxu0 %v1965
  %v2727 = vpop.f32.mrf.mxu0
  %v2728 = vadd.f32 0.0, %v2727
  %v2729 = vpop.f32.mrf.mxu0
  %2730 = vmatprep.mubr.f32.mxu0 %v2255
  %2731 = vmatmul.mubr.f32.gmra.mxu0 %v1967
  %v2732 = vpop.f32.mrf.mxu0
  %v2733 = vadd.f32 0.0, %v2732
  %v2734 = vpop.f32.mrf.mxu0
  %2735 = vmatprep.mubr.f32.mxu0 %v2258
  %2736 = vmatmul.mubr.f32.gmra.mxu0 %v1969
  %v2737 = vpop.f32.mrf.mxu0
  %v2738 = vadd.f32 0.0, %v2737
  %v2739 = vpop.f32.mrf.mxu0
  %2740 = vmatprep.mubr.f32.mxu0 %v2261
  %2741 = vmatmul.mubr.f32.gmra.mxu0 %v1971
  %v2742 = vpop.f32.mrf.mxu0
  %v2743 = vadd.f32 0.0, %v2742
  %v2744 = vpop.f32.mrf.mxu0
  %2745 = vmatprep.mubr.f32.mxu0 %v2264
  %2746 = vmatmul.mubr.f32.gmra.mxu0 %v1973
  %v2747 = vpop.f32.mrf.mxu0
  %v2748 = vadd.f32 0.0, %v2747
  %v2749 = vpop.f32.mrf.mxu0
  %2750 = vmatprep.mubr.f32.mxu0 %v2267
  %2751 = vmatmul.mubr.f32.gmra.mxu0 %v1975
  %v2752 = vpop.f32.mrf.mxu0
  %v2753 = vadd.f32 0.0, %v2752
  %v2754 = vpop.f32.mrf.mxu0
  %2755 = vmatprep.mubr.f32.mxu0 %v2270
  %2756 = vmatmul.mubr.f32.gmra.mxu0 %v1977
  %v2757 = vpop.f32.mrf.mxu0
  %v2758 = vadd.f32 0.0, %v2757
  %v2759 = vpop.f32.mrf.mxu0
  %2760 = vmatprep.mubr.f32.mxu0 %v2273
  %2761 = vmatmul.mubr.f32.gmra.mxu0 %v1979
  %v2762 = vpop.f32.mrf.mxu0
  %v2763 = vadd.f32 0.0, %v2762
  %v2764 = vpop.f32.mrf.mxu0
  %2765 = vmatprep.mubr.f32.mxu0 %v2276
  %2766 = vmatmul.mubr.f32.gmra.mxu0 %v1981
  %v2767 = vpop.f32.mrf.mxu0
  %v2768 = vadd.f32 0.0, %v2767
  %v2769 = vpop.f32.mrf.mxu0
  %2770 = vmatprep.mubr.f32.mxu0 %v2279
  %2771 = vmatmul.mubr.f32.gmra.mxu0 %v1983
  %v2772 = vpop.f32.mrf.mxu0
  %v2773 = vadd.f32 0.0, %v2772
  %v2774 = vpop.f32.mrf.mxu0
  %2775 = vmatprep.mubr.f32.mxu0 %v2282
  %2776 = vmatmul.mubr.f32.gmra.mxu0 %v1985
  %v2777 = vpop.f32.mrf.mxu0
  %v2778 = vadd.f32 0.0, %v2777
  %v2779 = vpop.f32.mrf.mxu0
  %2780 = vmatprep.mubr.f32.mxu0 %v2285
  %2781 = vmatmul.mubr.f32.gmra.mxu0 %v1987
  %v2782 = vpop.f32.mrf.mxu0
  %v2783 = vadd.f32 0.0, %v2782
  %v2784 = vpop.f32.mrf.mxu0
  %2785 = vmatprep.mubr.f32.mxu0 %v2288
  %2786 = vmatmul.mubr.f32.gmra.mxu0 %v1989
  %v2787 = vpop.f32.mrf.mxu0
  %v2788 = vadd.f32 0.0, %v2787
  %v2789 = vpop.f32.mrf.mxu0
  %2790 = vmatprep.mubr.f32.mxu0 %v2291
  %2791 = vmatmul.mubr.f32.gmra.mxu0 %v1991
  %v2792 = vpop.f32.mrf.mxu0
  %v2793 = vadd.f32 0.0, %v2792
  %v2794 = vpop.f32.mrf.mxu0
  %2795 = vmatprep.mubr.f32.mxu0 %v2294
  %2796 = vmatmul.mubr.f32.gmra.mxu0 %v1993
  %v2797 = vpop.f32.mrf.mxu0
  %v2798 = vadd.f32 0.0, %v2797
  %v2799 = vpop.f32.mrf.mxu0
  %2800 = vmatprep.mubr.f32.mxu0 %v2297
  %2801 = vmatmul.mubr.f32.gmra.mxu0 %v1995
  %v2802 = vpop.f32.mrf.mxu0
  %v2803 = vadd.f32 0.0, %v2802
  %v2804 = vpop.f32.mrf.mxu0
  %2805 = vmatprep.mubr.f32.mxu0 %v2300
  %2806 = vmatmul.mubr.f32.gmra.mxu0 %v1997
  %v2807 = vpop.f32.mrf.mxu0
  %v2808 = vadd.f32 0.0, %v2807
  %v2809 = vpop.f32.mrf.mxu0
  %2810 = vmatprep.mubr.f32.mxu0 %v2303
  %2811 = vmatmul.mubr.f32.gmra.mxu0 %v1999
  %v2812 = vpop.f32.mrf.mxu0
  %v2813 = vadd.f32 0.0, %v2812
  %v2814 = vpop.f32.mrf.mxu0
  %2815 = vmatprep.mubr.f32.mxu0 %v2306
  %2816 = vmatmul.mubr.f32.gmra.mxu0 %v2001
  %v2817 = vpop.f32.mrf.mxu0
  %v2818 = vadd.f32 0.0, %v2817
  %v2819 = vpop.f32.mrf.mxu0
  %2820 = vmatprep.mubr.f32.mxu0 %v2309
  %2821 = vmatmul.mubr.f32.gmra.mxu0 %v2003
  %v2822 = vpop.f32.mrf.mxu0
  %v2823 = vadd.f32 0.0, %v2822
  %v2824 = vpop.f32.mrf.mxu0
  %2825 = vmatprep.mubr.f32.mxu0 %v2312
  %2826 = vmatmul.mubr.f32.gmra.mxu0 %v2005
  %v2827 = vpop.f32.mrf.mxu0
  %v2828 = vadd.f32 0.0, %v2827
  %v2829 = vpop.f32.mrf.mxu0
  %2830 = vmatprep.mubr.f32.mxu0 %v2315
  %2831 = vmatmul.mubr.f32.gmra.mxu0 %v2007
  %v2832 = vpop.f32.mrf.mxu0
  %v2833 = vadd.f32 0.0, %v2832
  %v2834 = vpop.f32.mrf.mxu0
  %2835 = vmatprep.mubr.f32.mxu0 %v2318
  %2836 = vmatmul.mubr.f32.gmra.mxu0 %v2009
  %v2837 = vpop.f32.mrf.mxu0
  %v2838 = vadd.f32 0.0, %v2837
  %v2839 = vpop.f32.mrf.mxu0
  %2840 = vmatprep.mubr.f32.mxu0 %v2321
  %2841 = vmatmul.mubr.f32.gmra.mxu0 %v2011
  %v2842 = vpop.f32.mrf.mxu0
  %v2843 = vadd.f32 0.0, %v2842
  %v2844 = vpop.f32.mrf.mxu0
  %2845 = vmatprep.mubr.f32.mxu0 %v2324
  %2846 = vmatmul.mubr.f32.gmra.mxu0 %v2013
  %v2847 = vpop.f32.mrf.mxu0
  %v2848 = vadd.f32 0.0, %v2847
  %v2849 = vpop.f32.mrf.mxu0
  %2850 = vmatprep.mubr.f32.mxu0 %v2327
  %2851 = vmatmul.mubr.f32.gmra.mxu0 %v2015
  %v2852 = vpop.f32.mrf.mxu0
  %v2853 = vadd.f32 0.0, %v2852
  %v2854 = vpop.f32.mrf.mxu0
  %2855 = vmatprep.mubr.f32.mxu0 %v2330
  %2856 = vmatmul.mubr.f32.gmra.mxu0 %v2017
  %v2857 = vpop.f32.mrf.mxu0
  %v2858 = vadd.f32 0.0, %v2857
  %v2859 = vpop.f32.mrf.mxu0
  %2860 = vmatprep.mubr.f32.mxu0 %v2333
  %2861 = vmatmul.mubr.f32.gmra.mxu0 %v2019
  %v2862 = vpop.f32.mrf.mxu0
  %v2863 = vadd.f32 0.0, %v2862
  %v2864 = vpop.f32.mrf.mxu0
  %2865 = vmatprep.mubr.f32.mxu0 %v2336
  %2866 = vmatmul.mubr.f32.gmra.mxu0 %v2021
  %v2867 = vpop.f32.mrf.mxu0
  %v2868 = vadd.f32 0.0, %v2867
  %v2869 = vpop.f32.mrf.mxu0
  %2870 = vmatprep.mubr.f32.mxu0 %v2339
  %2871 = vmatmul.mubr.f32.gmra.mxu0 %v2023
  %v2872 = vpop.f32.mrf.mxu0
  %v2873 = vadd.f32 0.0, %v2872
  %v2874 = vpop.f32.mrf.mxu0
  %2875 = vmatprep.mubr.f32.mxu0 %v2342
  %2876 = vmatmul.mubr.f32.gmra.mxu0 %v2025
  %v2877 = vpop.f32.mrf.mxu0
  %v2878 = vadd.f32 0.0, %v2877
  %v2879 = vpop.f32.mrf.mxu0
  %2880 = vmatprep.mubr.f32.mxu0 %v2345
  %2881 = vmatmul.mubr.f32.gmra.mxu0 %v2027
  %v2882 = vpop.f32.mrf.mxu0
  %v2883 = vadd.f32 0.0, %v2882
  %v2884 = vpop.f32.mrf.mxu0
  %2885 = vmatprep.mubr.f32.mxu0 %v2348
  %2886 = vmatmul.mubr.f32.gmra.mxu0 %v2029
  %v2887 = vpop.f32.mrf.mxu0
  %v2888 = vadd.f32 0.0, %v2887
  %v2889 = vpop.f32.mrf.mxu0
  %2890 = vmatprep.mubr.f32.mxu0 %v2351
  %2891 = vmatmul.mubr.f32.gmra.mxu0 %v2031
  %v2892 = vpop.f32.mrf.mxu0
  %v2893 = vadd.f32 0.0, %v2892
  %v2894 = vpop.f32.mrf.mxu0
  %2895 = vmatprep.mubr.f32.mxu0 %v2354
  %2896 = vmatmul.mubr.f32.gmra.mxu0 %v2033
  %v2897 = vpop.f32.mrf.mxu0
  %v2898 = vadd.f32 0.0, %v2897
  %v2899 = vpop.f32.mrf.mxu0
  %2900 = vmatprep.mubr.f32.mxu0 %v2357
  %2901 = vmatmul.mubr.f32.gmra.mxu0 %v2035
  %v2902 = vpop.f32.mrf.mxu0
  %v2903 = vadd.f32 0.0, %v2902
  %v2904 = vpop.f32.mrf.mxu0
  %2905 = vmatprep.mubr.f32.mxu0 %v2360
  %2906 = vmatmul.mubr.f32.gmra.mxu0 %v2037
  %v2907 = vpop.f32.mrf.mxu0
  %v2908 = vadd.f32 0.0, %v2907
  %v2909 = vpop.f32.mrf.mxu0
  %2910 = vmatprep.mubr.f32.mxu0 %v2363
  %2911 = vmatmul.mubr.f32.gmra.mxu0 %v2039
  %v2912 = vpop.f32.mrf.mxu0
  %v2913 = vadd.f32 0.0, %v2912
  %v2914 = vpop.f32.mrf.mxu0
  %2915 = vmatprep.mubr.f32.mxu0 %v2366
  %2916 = vmatmul.mubr.f32.gmra.mxu0 %v2041
  %v2917 = vpop.f32.mrf.mxu0
  %v2918 = vadd.f32 0.0, %v2917
  %v2919 = vpop.f32.mrf.mxu0
  %2920 = vmatprep.mubr.f32.mxu0 %v2369
  %2921 = vmatmul.mubr.f32.gmra.mxu0 %v2043
  %v2922 = vpop.f32.mrf.mxu0
  %v2923 = vadd.f32 0.0, %v2922
  %v2924 = vpop.f32.mrf.mxu0
  %2925 = vmatprep.mubr.f32.mxu0 %v2372
  %2926 = vmatmul.mubr.f32.gmra.mxu0 %v2045
  %v2927 = vpop.f32.mrf.mxu0
  %v2928 = vadd.f32 0.0, %v2927
  %v2929 = vpop.f32.mrf.mxu0
  %2930 = vmatprep.mubr.f32.mxu0 %v2375
  %2931 = vmatmul.mubr.f32.gmra.mxu0 %v2047
  %v2932 = vpop.f32.mrf.mxu0
  %v2933 = vadd.f32 0.0, %v2932
  %v2934 = vpop.f32.mrf.mxu0
  %2935 = vmatprep.mubr.f32.mxu0 %v2378
  %2936 = vmatmul.mubr.f32.gmra.mxu0 %v2049
  %v2937 = vpop.f32.mrf.mxu0
  %v2938 = vadd.f32 0.0, %v2937
  %v2939 = vpop.f32.mrf.mxu0
  %2940 = vmatprep.mubr.f32.mxu0 %v2381
  %2941 = vmatmul.mubr.f32.gmra.mxu0 %v2051
  %v2942 = vpop.f32.mrf.mxu0
  %v2943 = vadd.f32 0.0, %v2942
  %v2944 = vpop.f32.mrf.mxu0
  %2945 = vmatprep.mubr.f32.mxu0 %v2384
  %2946 = vmatmul.mubr.f32.gmra.mxu0 %v2053
  %v2947 = vpop.f32.mrf.mxu0
  %v2948 = vadd.f32 0.0, %v2947
  %v2949 = vpop.f32.mrf.mxu0
  %2950 = vmatprep.mubr.f32.mxu0 %v2387
  %2951 = vmatmul.mubr.f32.gmra.mxu0 %v2055
  %v2952 = vpop.f32.mrf.mxu0
  %v2953 = vadd.f32 0.0, %v2952
  %v2954 = vpop.f32.mrf.mxu0
  %2955 = vmatprep.mubr.f32.mxu0 %v2390
  %2956 = vmatmul.mubr.f32.gmra.mxu0 %v2057
  %v2957 = vpop.f32.mrf.mxu0
  %v2958 = vadd.f32 0.0, %v2957
  %v2959 = vpop.f32.mrf.mxu0
  %2960 = vmatprep.mubr.f32.mxu0 %v2393
  %2961 = vmatmul.mubr.f32.gmra.mxu0 %v2059
  %v2962 = vpop.f32.mrf.mxu0
  %v2963 = vadd.f32 0.0, %v2962
  %v2964 = vpop.f32.mrf.mxu0
  %2965 = vmatprep.mubr.f32.mxu0 %v2396
  %2966 = vmatmul.mubr.f32.gmra.mxu0 %v2061
  %v2967 = vpop.f32.mrf.mxu0
  %v2968 = vadd.f32 0.0, %v2967
  %v2969 = vpop.f32.mrf.mxu0
  %2970 = vmatprep.mubr.f32.mxu0 %v2399
  %2971 = vmatmul.mubr.f32.gmra.mxu0 %v2063
  %v2972 = vpop.f32.mrf.mxu0
  %v2973 = vadd.f32 0.0, %v2972
  %v2974 = vpop.f32.mrf.mxu0
  %2975 = vmatprep.mubr.f32.mxu0 %v2402
  %2976 = vmatmul.mubr.f32.gmra.mxu0 %v2065
  %v2977 = vpop.f32.mrf.mxu0
  %v2978 = vadd.f32 0.0, %v2977
  %v2979 = vpop.f32.mrf.mxu0
  %2980 = vmatprep.mubr.f32.mxu0 %v2405
  %2981 = vmatmul.mubr.f32.gmra.mxu0 %v2067
  %v2982 = vpop.f32.mrf.mxu0
  %v2983 = vadd.f32 0.0, %v2982
  %v2984 = vpop.f32.mrf.mxu0
  %2985 = vmatprep.mubr.f32.mxu0 %v2408
  %2986 = vmatmul.mubr.f32.gmra.mxu0 %v2069
  %v2987 = vpop.f32.mrf.mxu0
  %v2988 = vadd.f32 0.0, %v2987
  %v2989 = vpop.f32.mrf.mxu0
  %2990 = vmatprep.mubr.f32.mxu0 %v2411
  %2991 = vmatmul.mubr.f32.gmra.mxu0 %v2071
  %v2992 = vpop.f32.mrf.mxu0
  %v2993 = vadd.f32 0.0, %v2992
  %v2994 = vpop.f32.mrf.mxu0
  %2995 = vmatprep.mubr.f32.mxu0 %v2414
  %2996 = vmatmul.mubr.f32.gmra.mxu0 %v2073
  %v2997 = vpop.f32.mrf.mxu0
  %v2998 = vadd.f32 0.0, %v2997
  %v2999 = vpop.f32.mrf.mxu0
  %3000 = vmatprep.mubr.f32.mxu0 %v2417
  %3001 = vmatmul.mubr.f32.gmra.mxu0 %v2075
  %v3002 = vpop.f32.mrf.mxu0
  %v3003 = vadd.f32 0.0, %v3002
  %v3004 = vpop.f32.mrf.mxu0
  %3005 = vmatprep.mubr.f32.mxu0 %v2420
  %3006 = vmatmul.mubr.f32.gmra.mxu0 %v2077
  %v3007 = vpop.f32.mrf.mxu0
  %v3008 = vadd.f32 0.0, %v3007
  %v3009 = vpop.f32.mrf.mxu0
  %3010 = vmatprep.mubr.f32.mxu0 %v2423
  %3011 = vmatmul.mubr.f32.gmra.mxu0 %v2079
  %v3012 = vpop.f32.mrf.mxu0
  %v3013 = vadd.f32 0.0, %v3012
  %v3014 = vpop.f32.mrf.mxu0
  %3015 = vmatprep.mubr.f32.mxu0 %v2426
  %3016 = vmatmul.mubr.f32.gmra.mxu0 %v2081
  %v3017 = vpop.f32.mrf.mxu0
  %v3018 = vadd.f32 0.0, %v3017
  %v3019 = vpop.f32.mrf.mxu0
  %3020 = vmatprep.mubr.f32.mxu0 %v2429
  %3021 = vmatmul.mubr.f32.gmra.mxu0 %v2083
  %v3022 = vpop.f32.mrf.mxu0
  %v3023 = vadd.f32 0.0, %v3022
  %v3024 = vpop.f32.mrf.mxu0
  %3025 = vmatprep.mubr.f32.mxu0 %v2432
  %3026 = vmatmul.mubr.f32.gmra.mxu0 %v2085
  %v3027 = vpop.f32.mrf.mxu0
  %v3028 = vadd.f32 0.0, %v3027
  %v3029 = vpop.f32.mrf.mxu0
  %3030 = vmatprep.mubr.f32.mxu0 %v2435
  %3031 = vmatmul.mubr.f32.gmra.mxu0 %v2087
  %v3032 = vpop.f32.mrf.mxu0
  %v3033 = vadd.f32 0.0, %v3032
  %v3034 = vpop.f32.mrf.mxu0
  %3035 = vmatprep.mubr.f32.mxu0 %v2438
  %3036 = vmatmul.mubr.f32.gmra.mxu0 %v2089
  %v3037 = vpop.f32.mrf.mxu0
  %v3038 = vadd.f32 0.0, %v3037
  %v3039 = vpop.f32.mrf.mxu0
  %3040 = vmatprep.mubr.f32.mxu0 %v2441
  %3041 = vmatmul.mubr.f32.gmra.mxu0 %v2091
  %v3042 = vpop.f32.mrf.mxu0
  %v3043 = vadd.f32 0.0, %v3042
  %v3044 = vpop.f32.mrf.mxu0
  %3045 = vmatprep.mubr.f32.mxu0 %v2444
  %3046 = vmatmul.mubr.f32.gmra.mxu0 %v2093
  %v3047 = vpop.f32.mrf.mxu0
  %v3048 = vadd.f32 0.0, %v3047
  %v3049 = vpop.f32.mrf.mxu0
  %3050 = vmatprep.mubr.f32.mxu0 %v2447
  %3051 = vmatmul.mubr.f32.gmra.mxu0 %v2095
  %v3052 = vpop.f32.mrf.mxu0
  %v3053 = vadd.f32 0.0, %v3052
  %v3054 = vpop.f32.mrf.mxu0
  %3055 = vmatprep.mubr.f32.mxu0 %v2450
  %3056 = vmatmul.mubr.f32.gmra.mxu0 %v2097
  %v3057 = vpop.f32.mrf.mxu0
  %v3058 = vadd.f32 0.0, %v3057
  %v3059 = vpop.f32.mrf.mxu0
  %3060 = vmatprep.mubr.f32.mxu0 %v2453
  %3061 = vmatmul.mubr.f32.gmra.mxu0 %v2099
  %v3062 = vpop.f32.mrf.mxu0
  %v3063 = vadd.f32 0.0, %v3062
  %v3064 = vpop.f32.mrf.mxu0
  %3065 = vmatprep.mubr.f32.mxu0 %v2456
  %3066 = vmatmul.mubr.f32.gmra.mxu0 %v2101
  %v3067 = vpop.f32.mrf.mxu0
  %v3068 = vadd.f32 0.0, %v3067
  %v3069 = vpop.f32.mrf.mxu0
  %3070 = vmatprep.mubr.f32.mxu0 %v2459
  %3071 = vmatmul.mubr.f32.gmra.mxu0 %v2103
  %v3072 = vpop.f32.mrf.mxu0
  %v3073 = vadd.f32 0.0, %v3072
  %v3074 = vpop.f32.mrf.mxu0
  %3075 = vmatprep.mubr.f32.mxu0 %v2462
  %3076 = vmatmul.mubr.f32.gmra.mxu0 %v2105
  %v3077 = vpop.f32.mrf.mxu0
  %v3078 = vadd.f32 0.0, %v3077
  %v3079 = vpop.f32.mrf.mxu0
  %3080 = vmatprep.mubr.f32.mxu0 %v2465
  %3081 = vmatmul.mubr.f32.gmra.mxu0 %v2107
  %v3082 = vpop.f32.mrf.mxu0
  %v3083 = vadd.f32 0.0, %v3082
  %v3084 = vpop.f32.mrf.mxu0
  %3085 = vmatprep.mubr.f32.mxu0 %v2468
  %3086 = vmatmul.mubr.f32.gmra.mxu0 %v2109
  %v3087 = vpop.f32.mrf.mxu0
  %v3088 = vadd.f32 0.0, %v3087
  %v3089 = vpop.f32.mrf.mxu0
  %3090 = vmatprep.mubr.f32.mxu0 %v2471
  %3091 = vmatmul.mubr.f32.gmra.mxu0 %v2111
  %v3092 = vpop.f32.mrf.mxu0
  %v3093 = vadd.f32 0.0, %v3092
  %v3094 = vpop.f32.mrf.mxu0
  %3095 = vmatprep.mubr.f32.mxu0 %v2474
  %3096 = vmatmul.mubr.f32.gmra.mxu0 %v2113
  %v3097 = vpop.f32.mrf.mxu0
  %v3098 = vadd.f32 0.0, %v3097
  %v3099 = vpop.f32.mrf.mxu0
  %3100 = vdwg.mxu0
  %v3101 = vadd.f32 %v1333, %v2543
  %v3102 = vadd.f32 %v1338, %v2548
  %v3103 = vadd.f32 %v1343, %v2553
  %v3104 = vadd.f32 %v1348, %v2558
  %v3105 = vadd.f32 %v1353, %v2563
  %v3106 = vadd.f32 %v1358, %v2568
  %v3107 = vadd.f32 %v1363, %v2573
  %v3108 = vadd.f32 %v1368, %v2578
  %v3109 = vadd.f32 %v1373, %v2583
  %v3110 = vadd.f32 %v1378, %v2588
  %v3111 = vadd.f32 %v1383, %v2593
  %v3112 = vadd.f32 %v1388, %v2598
  %v3113 = vadd.f32 %v1393, %v2603
  %v3114 = vadd.f32 %v1398, %v2608
  %v3115 = vadd.f32 %v1403, %v2613
  %v3116 = vadd.f32 %v1408, %v2618
  %v3117 = vadd.f32 %v1413, %v2623
  %v3118 = vadd.f32 %v1418, %v2628
  %v3119 = vadd.f32 %v1423, %v2633
  %v3120 = vadd.f32 %v1428, %v2638
  %v3121 = vadd.f32 %v1433, %v2643
  %v3122 = vadd.f32 %v1438, %v2648
  %v3123 = vadd.f32 %v1443, %v2653
  %v3124 = vadd.f32 %v1448, %v2658
  %v3125 = vadd.f32 %v1453, %v2663
  %v3126 = vadd.f32 %v1458, %v2668
  %v3127 = vadd.f32 %v1463, %v2673
  %v3128 = vadd.f32 %v1468, %v2678
  %v3129 = vadd.f32 %v1473, %v2683
  %v3130 = vadd.f32 %v1478, %v2688
  %v3131 = vadd.f32 %v1483, %v2693
  %v3132 = vadd.f32 %v1488, %v2698
  %v3133 = vadd.f32 %v1493, %v2703
  %v3134 = vadd.f32 %v1498, %v2708
  %v3135 = vadd.f32 %v1503, %v2713
  %v3136 = vadd.f32 %v1508, %v2718
  %v3137 = vadd.f32 %v1513, %v2723
  %v3138 = vadd.f32 %v1518, %v2728
  %v3139 = vadd.f32 %v1523, %v2733
  %v3140 = vadd.f32 %v1528, %v2738
  %v3141 = vadd.f32 %v1533, %v2743
  %v3142 = vadd.f32 %v1538, %v2748
  %v3143 = vadd.f32 %v1543, %v2753
  %v3144 = vadd.f32 %v1548, %v2758
  %v3145 = vadd.f32 %v1553, %v2763
  %v3146 = vadd.f32 %v1558, %v2768
  %v3147 = vadd.f32 %v1563, %v2773
  %v3148 = vadd.f32 %v1568, %v2778
  %v3149 = vadd.f32 %v1573, %v2783
  %v3150 = vadd.f32 %v1578, %v2788
  %v3151 = vadd.f32 %v1583, %v2793
  %v3152 = vadd.f32 %v1588, %v2798
  %v3153 = vadd.f32 %v1593, %v2803
  %v3154 = vadd.f32 %v1598, %v2808
  %v3155 = vadd.f32 %v1603, %v2813
  %v3156 = vadd.f32 %v1608, %v2818
  %v3157 = vadd.f32 %v1613, %v2823
  %v3158 = vadd.f32 %v1618, %v2828
  %v3159 = vadd.f32 %v1623, %v2833
  %v3160 = vadd.f32 %v1628, %v2838
  %v3161 = vadd.f32 %v1633, %v2843
  %v3162 = vadd.f32 %v1638, %v2848
  %v3163 = vadd.f32 %v1643, %v2853
  %v3164 = vadd.f32 %v1648, %v2858
  %v3165 = vadd.f32 %v1653, %v2863
  %v3166 = vadd.f32 %v1658, %v2868
  %v3167 = vadd.f32 %v1663, %v2873
  %v3168 = vadd.f32 %v1668, %v2878
  %v3169 = vadd.f32 %v1673, %v2883
  %v3170 = vadd.f32 %v1678, %v2888
  %v3171 = vadd.f32 %v1683, %v2893
  %v3172 = vadd.f32 %v1688, %v2898
  %v3173 = vadd.f32 %v1693, %v2903
  %v3174 = vadd.f32 %v1698, %v2908
  %v3175 = vadd.f32 %v1703, %v2913
  %v3176 = vadd.f32 %v1708, %v2918
  %v3177 = vadd.f32 %v1713, %v2923
  %v3178 = vadd.f32 %v1718, %v2928
  %v3179 = vadd.f32 %v1723, %v2933
  %v3180 = vadd.f32 %v1728, %v2938
  %v3181 = vadd.f32 %v1733, %v2943
  %v3182 = vadd.f32 %v1738, %v2948
  %v3183 = vadd.f32 %v1743, %v2953
  %v3184 = vadd.f32 %v1748, %v2958
  %v3185 = vadd.f32 %v1753, %v2963
  %v3186 = vadd.f32 %v1758, %v2968
  %v3187 = vadd.f32 %v1763, %v2973
  %v3188 = vadd.f32 %v1768, %v2978
  %v3189 = vadd.f32 %v1773, %v2983
  %v3190 = vadd.f32 %v1778, %v2988
  %v3191 = vadd.f32 %v1783, %v2993
  %v3192 = vadd.f32 %v1788, %v2998
  %v3193 = vadd.f32 %v1793, %v3003
  %v3194 = vadd.f32 %v1798, %v3008
  %v3195 = vadd.f32 %v1803, %v3013
  %v3196 = vadd.f32 %v1808, %v3018
  %v3197 = vadd.f32 %v1813, %v3023
  %v3198 = vadd.f32 %v1818, %v3028
  %v3199 = vadd.f32 %v1823, %v3033
  %v3200 = vadd.f32 %v1828, %v3038
  %v3201 = vadd.f32 %v1833, %v3043
  %v3202 = vadd.f32 %v1838, %v3048
  %v3203 = vadd.f32 %v1843, %v3053
  %v3204 = vadd.f32 %v1848, %v3058
  %v3205 = vadd.f32 %v1853, %v3063
  %v3206 = vadd.f32 %v1858, %v3068
  %v3207 = vadd.f32 %v1863, %v3073
  %v3208 = vadd.f32 %v1868, %v3078
  %v3209 = vadd.f32 %v1873, %v3083
  %v3210 = vadd.f32 %v1878, %v3088
  %v3211 = vadd.f32 %v1883, %v3093
  %v3212 = vadd.f32 %v1888, %v3098
  %3213 = vst [vmem:[%s2] sm:$0xff] %v3101
  %3214 = vst [vmem:[%s2 + $0x8] sm:$0xff] %v3102
  %3215 = vst [vmem:[%s2 + $0x10] sm:$0xff] %v3103
  %3216 = vst [vmem:[%s2 + $0x18] sm:$0xff] %v3104
  %3217 = vst [vmem:[%s2 + $0x20] sm:$0xff] %v3105
  %3218 = vst [vmem:[%s2 + $0x28] sm:$0xff] %v3106
  %3219 = vst [vmem:[%s2 + $0x30] sm:$0xff] %v3107
  %3220 = vst [vmem:[%s2 + $0x38] sm:$0xff] %v3108
  %3221 = vst [vmem:[%s2 + $0x40] sm:$0xff] %v3109
  %3222 = vst [vmem:[%s2 + $0x48] sm:$0xff] %v3110
  %3223 = vst [vmem:[%s2 + $0x50] sm:$0xff] %v3111
  %3224 = vst [vmem:[%s2 + $0x58] sm:$0xff] %v3112
  %3225 = vst [vmem:[%s2 + $0x60] sm:$0xff] %v3113
  %3226 = vst [vmem:[%s2 + $0x68] sm:$0xff] %v3114
  %3227 = vst [vmem:[%s2 + $0x70] sm:$0xff] %v3115
  %3228 = vst [vmem:[%s2 + $0x78] sm:$0xff] %v3116
  %3229 = vst [vmem:[%s2 + $0x80] sm:$0xff] %v3117
  %3230 = vst [vmem:[%s2 + $0x88] sm:$0xff] %v3118
  %3231 = vst [vmem:[%s2 + $0x90] sm:$0xff] %v3119
  %3232 = vst [vmem:[%s2 + $0x98] sm:$0xff] %v3120
  %3233 = vst [vmem:[%s2 + $0xa0] sm:$0xff] %v3121
  %3234 = vst [vmem:[%s2 + $0xa8] sm:$0xff] %v3122
  %3235 = vst [vmem:[%s2 + $0xb0] sm:$0xff] %v3123
  %3236 = vst [vmem:[%s2 + $0xb8] sm:$0xff] %v3124
  %3237 = vst [vmem:[%s2 + $0xc0] sm:$0xff] %v3125
  %3238 = vst [vmem:[%s2 + $0xc8] sm:$0xff] %v3126
  %3239 = vst [vmem:[%s2 + $0xd0] sm:$0xff] %v3127
  %3240 = vst [vmem:[%s2 + $0xd8] sm:$0xff] %v3128
  %3241 = vst [vmem:[%s2 + $0xe0] sm:$0xff] %v3129
  %3242 = vst [vmem:[%s2 + $0xe8] sm:$0xff] %v3130
  %3243 = vst [vmem:[%s2 + $0xf0] sm:$0xff] %v3131
  %3244 = vst [vmem:[%s2 + $0xf8] sm:$0xff] %v3132
  %3245 = vst [vmem:[%s2 + $0x100] sm:$0xff] %v3133
  %3246 = vst [vmem:[%s2 + $0x108] sm:$0xff] %v3134
  %3247 = vst [vmem:[%s2 + $0x110] sm:$0xff] %v3135
  %3248 = vst [vmem:[%s2 + $0x118] sm:$0xff] %v3136
  %3249 = vst [vmem:[%s2 + $0x120] sm:$0xff] %v3137
  %3250 = vst [vmem:[%s2 + $0x128] sm:$0xff] %v3138
  %3251 = vst [vmem:[%s2 + $0x130] sm:$0xff] %v3139
  %3252 = vst [vmem:[%s2 + $0x138] sm:$0xff] %v3140
  %3253 = vst [vmem:[%s2 + $0x140] sm:$0xff] %v3141
  %3254 = vst [vmem:[%s2 + $0x148] sm:$0xff] %v3142
  %3255 = vst [vmem:[%s2 + $0x150] sm:$0xff] %v3143
  %3256 = vst [vmem:[%s2 + $0x158] sm:$0xff] %v3144
  %3257 = vst [vmem:[%s2 + $0x160] sm:$0xff] %v3145
  %3258 = vst [vmem:[%s2 + $0x168] sm:$0xff] %v3146
  %3259 = vst [vmem:[%s2 + $0x170] sm:$0xff] %v3147
  %3260 = vst [vmem:[%s2 + $0x178] sm:$0xff] %v3148
  %3261 = vst [vmem:[%s2 + $0x180] sm:$0xff] %v3149
  %3262 = vst [vmem:[%s2 + $0x188] sm:$0xff] %v3150
  %3263 = vst [vmem:[%s2 + $0x190] sm:$0xff] %v3151
  %3264 = vst [vmem:[%s2 + $0x198] sm:$0xff] %v3152
  %3265 = vst [vmem:[%s2 + $0x1a0] sm:$0xff] %v3153
  %3266 = vst [vmem:[%s2 + $0x1a8] sm:$0xff] %v3154
  %3267 = vst [vmem:[%s2 + $0x1b0] sm:$0xff] %v3155
  %3268 = vst [vmem:[%s2 + $0x1b8] sm:$0xff] %v3156
  %3269 = vst [vmem:[%s2 + $0x1c0] sm:$0xff] %v3157
  %3270 = vst [vmem:[%s2 + $0x1c8] sm:$0xff] %v3158
  %3271 = vst [vmem:[%s2 + $0x1d0] sm:$0xff] %v3159
  %3272 = vst [vmem:[%s2 + $0x1d8] sm:$0xff] %v3160
  %3273 = vst [vmem:[%s2 + $0x1e0] sm:$0xff] %v3161
  %3274 = vst [vmem:[%s2 + $0x1e8] sm:$0xff] %v3162
  %3275 = vst [vmem:[%s2 + $0x1f0] sm:$0xff] %v3163
  %3276 = vst [vmem:[%s2 + $0x1f8] sm:$0xff] %v3164
  %3277 = vst [vmem:[%s2 + $0x200] sm:$0xff] %v3165
  %3278 = vst [vmem:[%s2 + $0x208] sm:$0xff] %v3166
  %3279 = vst [vmem:[%s2 + $0x210] sm:$0xff] %v3167
  %3280 = vst [vmem:[%s2 + $0x218] sm:$0xff] %v3168
  %3281 = vst [vmem:[%s2 + $0x220] sm:$0xff] %v3169
  %3282 = vst [vmem:[%s2 + $0x228] sm:$0xff] %v3170
  %3283 = vst [vmem:[%s2 + $0x230] sm:$0xff] %v3171
  %3284 = vst [vmem:[%s2 + $0x238] sm:$0xff] %v3172
  %3285 = vst [vmem:[%s2 + $0x240] sm:$0xff] %v3173
  %3286 = vst [vmem:[%s2 + $0x248] sm:$0xff] %v3174
  %3287 = vst [vmem:[%s2 + $0x250] sm:$0xff] %v3175
  %3288 = vst [vmem:[%s2 + $0x258] sm:$0xff] %v3176
  %3289 = vst [vmem:[%s2 + $0x260] sm:$0xff] %v3177
  %3290 = vst [vmem:[%s2 + $0x268] sm:$0xff] %v3178
  %3291 = vst [vmem:[%s2 + $0x270] sm:$0xff] %v3179
  %3292 = vst [vmem:[%s2 + $0x278] sm:$0xff] %v3180
  %3293 = vst [vmem:[%s2 + $0x280] sm:$0xff] %v3181
  %3294 = vst [vmem:[%s2 + $0x288] sm:$0xff] %v3182
  %3295 = vst [vmem:[%s2 + $0x290] sm:$0xff] %v3183
  %3296 = vst [vmem:[%s2 + $0x298] sm:$0xff] %v3184
  %3297 = vst [vmem:[%s2 + $0x2a0] sm:$0xff] %v3185
  %3298 = vst [vmem:[%s2 + $0x2a8] sm:$0xff] %v3186
  %3299 = vst [vmem:[%s2 + $0x2b0] sm:$0xff] %v3187
  %3300 = vst [vmem:[%s2 + $0x2b8] sm:$0xff] %v3188
  %3301 = vst [vmem:[%s2 + $0x2c0] sm:$0xff] %v3189
  %3302 = vst [vmem:[%s2 + $0x2c8] sm:$0xff] %v3190
  %3303 = vst [vmem:[%s2 + $0x2d0] sm:$0xff] %v3191
  %3304 = vst [vmem:[%s2 + $0x2d8] sm:$0xff] %v3192
  %3305 = vst [vmem:[%s2 + $0x2e0] sm:$0xff] %v3193
  %3306 = vst [vmem:[%s2 + $0x2e8] sm:$0xff] %v3194
  %3307 = vst [vmem:[%s2 + $0x2f0] sm:$0xff] %v3195
  %3308 = vst [vmem:[%s2 + $0x2f8] sm:$0xff] %v3196
  %3309 = vst [vmem:[%s2 + $0x300] sm:$0xff] %v3197
  %3310 = vst [vmem:[%s2 + $0x308] sm:$0xff] %v3198
  %3311 = vst [vmem:[%s2 + $0x310] sm:$0xff] %v3199
  %3312 = vst [vmem:[%s2 + $0x318] sm:$0xff] %v3200
  %3313 = vst [vmem:[%s2 + $0x320] sm:$0xff] %v3201
  %3314 = vst [vmem:[%s2 + $0x328] sm:$0xff] %v3202
  %3315 = vst [vmem:[%s2 + $0x330] sm:$0xff] %v3203
  %3316 = vst [vmem:[%s2 + $0x338] sm:$0xff] %v3204
  %3317 = vst [vmem:[%s2 + $0x340] sm:$0xff] %v3205
  %3318 = vst [vmem:[%s2 + $0x348] sm:$0xff] %v3206
  %3319 = vst [vmem:[%s2 + $0x350] sm:$0xff] %v3207
  %3320 = vst [vmem:[%s2 + $0x358] sm:$0xff] %v3208
  %3321 = vst [vmem:[%s2 + $0x360] sm:$0xff] %v3209
  %3322 = vst [vmem:[%s2 + $0x368] sm:$0xff] %v3210
  %3323 = vst [vmem:[%s2 + $0x370] sm:$0xff] %v3211
  %3324 = vst [vmem:[%s2 + $0x378] sm:$0xff] %v3212
  // Predicated region
  $region10: #{forward.1} parent=0 // pred_check
    _
  $region11: #{forward.1} parent=0 // pred_check_branch
    %3326 = sbr.rel (0) target = $region13
  $region12: #{forward.1} parent=0 // pred_region
    _
  $region13: #{forward.1} parent=0 // pred_fallthru
    _
  // Predicated region
  $region14: #{forward.1} parent=0 // pred_check
    _
  $region15: #{forward.1} parent=0 // pred_check_branch
    %3328 = sbr.rel (0) target = $region17
  $region16: #{forward.1} parent=0 // pred_region
    _
  $region17: #{forward.1} parent=0 // pred_fallthru
    _

</llo_original>
